<compile_context>
chip_gen: v5e
topology: v5e:2x2
jax: 0.10.0
libtpu: 0.0.40
codegen_flags: <defaults>
</compile_context>

<pallas_src>
import functools
import numpy as np
import jax
import jax.numpy as jnp
from jax.experimental import pallas as pl
from jax.experimental.pallas import tpu as pltpu


# ------------------------------ configuration ------------------------------

def _round_up(x, m):
    return ((x + m - 1) // m) * m


def _choose_tile(dim_padded, tile_max):
    """Largest multiple of 128 that divides dim_padded and is <= tile_max."""
    q = dim_padded // 128
    best = 1
    for d in range(1, q + 1):
        if q % d == 0 and d * 128 <= tile_max:
            best = d
    return best * 128


def _choose_tn(np_):
    """Column tile: as large as possible (fewer, larger weight DMAs on the
    HBM-bound deep layers) while keeping >=2 column blocks on wide layers so the
    'parallel' grid axis can be split across both v7x TensorCores."""
    return _choose_tile(np_, min(1024, max(128, np_ // 2)))


def _is_v7x():
    try:
        kind = jax.devices()[0].device_kind.lower()
    except Exception:
        return False
    return ("v7" in kind) or ("7x" in kind)


# int8 weight streaming (dequantized to bf16 in-kernel) halves HBM weight bytes
# on the GEMV-like deep layers that dominate the forward (v5e/v6e).  On v7x the
# much higher HBM BW makes the in-kernel int8->bf16 convert the bottleneck, so
# weights stay bf16 there.  TODO(synk): fp8 (e4m3) weights for v7x.
_QUANT_WEIGHTS = not _is_v7x()
_QUANT_MIN_ELEMS = 1 << 20          # only quantize the >=2 MB (bf16) matrices
_VMEM_LIMIT = 48 * 1024 * 1024      # explicit; fits v7x's 64 MiB physical VMEM


# ------------------------------ Pallas kernels ------------------------------

def _mm_bn_relu_kernel(a_ref, w_ref, s_ref, g_ref, be_ref, o_ref, acc_ref):
    """out = relu(batchnorm(dequant(a @ w))) fused into the matmul epilogue.

    * Conv bias is dropped: a per-channel constant added before training-mode
      BN cancels exactly in (y - mean).
    * Per-output-channel dequant scale (int8 weights) is applied to the f32
      accumulator BEFORE the batch statistics (folding into gamma would be
      inexact because of eps); for bf16 weights the scale is 1.0.
    * Valid only because M (= N*H*W rows) is never tiled, so each TN tile sees
      every row needed for the biased batch statistics (eps = 1e-5).  Padded
      weight/gamma/beta columns are all-zero -> padded outputs are exactly 0.
    * One-pass stats (sum, sum of squares); epilogue math stays f32 (v5e has
      no bf16 VPU/EUP).  Output is stored lane-dense as bf16."""
    @pl.when(pl.program_id(1) == 0)
    def _():
        acc_ref[...] = jnp.zeros_like(acc_ref)

    # For int8 weights this is the only in-kernel dequant cost; for bf16 the
    # astype is a no-op.
    acc_ref[...] += jnp.dot(a_ref[...], w_ref[...].astype(jnp.bfloat16),
                            preferred_element_type=jnp.float32)

    @pl.when(pl.program_id(1) == pl.num_programs(1) - 1)
    def _():
        y = acc_ref[...] * s_ref[...]
        inv_m = 1.0 / y.shape[0]                    # static trip count
        mean = jnp.sum(y, axis=0, keepdims=True) * inv_m
        msq = jnp.sum(y * y, axis=0, keepdims=True) * inv_m
        var = msq - mean * mean
        scale = jax.lax.rsqrt(var + 1e-5) * g_ref[...]
        o_ref[...] = jnp.maximum((y - mean) * scale + be_ref[...],
                                 0.0).astype(o_ref.dtype)


def _mm_bias_kernel(a_ref, w_ref, s_ref, b_ref, o_ref, acc_ref):
    """out = dequant(a @ w) + b  (ConvTranspose path).  grid = (N_tiles, K_tiles)."""
    @pl.when(pl.program_id(1) == 0)
    def _():
        acc_ref[...] = jnp.zeros_like(acc_ref)

    acc_ref[...] += jnp.dot(a_ref[...], w_ref[...].astype(jnp.bfloat16),
                            preferred_element_type=jnp.float32)

    @pl.when(pl.program_id(1) == pl.num_programs(1) - 1)
    def _():
        o_ref[...] = (acc_ref[...] * s_ref[...] + b_ref[...]).astype(o_ref.dtype)


def _mm_bias_sigmoid_kernel(x_ref, w_ref, b_ref, o_ref):
    y = jnp.dot(x_ref[...], w_ref[...],
                preferred_element_type=jnp.float32) + b_ref[...]
    o_ref[...] = jax.nn.sigmoid(y)


def _maxpool2_kernel(x_ref, o_ref, *, C):
    # x_ref: (N, h2, 2, w2, 2*C) -- a free (contiguous) reshape of the NHWC
    # activation; the 2x2 window is reduced entirely in-kernel.
    v = x_ref[...]
    m = jnp.maximum(v[:, :, 0], v[:, :, 1])           # pool over the H pair
    o_ref[...] = jnp.maximum(m[..., :C], m[..., C:])  # pool over the W pair


# ------------------------------ Pallas wrappers ------------------------------

def _weight_spec(TK, TN, k_blocks):
    index_map = lambda j, k: (k, j)
    if k_blocks >= 2:
        # Triple-buffer the weight stream: with 8-512 activation rows there is
        # essentially no compute to hide DMA behind, so keep the DMA engine
        # busy across the epilogue/step boundary (biggest help on v7x).
        try:
            return pl.BlockSpec((TK, TN), index_map,
                                pipeline_mode=pl.Buffered(3))
        except TypeError:   # older jax: fall back to default double-buffering
            pass
    return pl.BlockSpec((TK, TN), index_map)


def pallas_matmul_packed(a, pk, *, epilogue):
    """a:(M,K) activations; pk: pre-packed weight dict (bf16 or int8 + scales).

    Activations are cast to bf16 for the MXU; accumulation is f32 in VMEM.
    M is never tiled (required for the fused training-mode BN statistics)."""
    M, K = a.shape
    Kp, Np = pk['w'].shape
    TK, TN = pk['tk'], pk['tn']
    if Kp != K:
        a = jnp.pad(a, ((0, 0), (0, Kp - K)))
    a = a.astype(jnp.bfloat16)
    k_blocks = Kp // TK
    grid = (Np // TN, k_blocks)

    col_spec = pl.BlockSpec((1, TN), lambda j, k: (0, j))
    if epilogue == 'bn_relu':
        kernel = _mm_bn_relu_kernel
        extra_in = (pk['s'], pk['g'], pk['be'])
    else:
        kernel = _mm_bias_kernel
        extra_in = (pk['s'], pk['b'])
    extra_specs = [col_spec] * len(extra_in)

    out = pl.pallas_call(
        kernel,
        out_shape=jax.ShapeDtypeStruct((M, Np), jnp.bfloat16),
        grid_spec=pltpu.PrefetchScalarGridSpec(
            num_scalar_prefetch=0,
            grid=grid,
            in_specs=[pl.BlockSpec((M, TK), lambda j, k: (0, k)),
                      _weight_spec(TK, TN, k_blocks)] + extra_specs,
            out_specs=pl.BlockSpec((M, TN), lambda j, k: (0, j)),
            scratch_shapes=[pltpu.VMEM((M, TN), jnp.float32)],
        ),
        compiler_params=pltpu.CompilerParams(
            dimension_semantics=("parallel", "arbitrary"),
            vmem_limit_bytes=_VMEM_LIMIT),
    )(a, pk['w'], *extra_in)
    return out[:, :pk['n']]


def pallas_maxpool2(x):
    """MaxPool2d(2) on an NHWC activation, fully in-kernel (read exactly once)."""
    Nb, H, W, C = x.shape
    h2, w2 = H // 2, W // 2
    xr = x.reshape(Nb, h2, 2, w2, 2 * C)  # pure view of contiguous NHWC
    return pl.pallas_call(
        functools.partial(_maxpool2_kernel, C=C),
        out_shape=jax.ShapeDtypeStruct((Nb, h2, w2, C), x.dtype),
        grid=(1,),
        in_specs=[pl.BlockSpec((Nb, h2, 2, w2, 2 * C),
                               lambda i: (0, 0, 0, 0, 0))],
        out_specs=pl.BlockSpec((Nb, h2, w2, C), lambda i: (0, 0, 0, 0)),
    )(xr)


def pallas_conv1x1_sigmoid(x, pk):
    """x:(M,Cin) @ w + b, then sigmoid; output padded to 128 lanes in-kernel."""
    M, Cin = x.shape
    Np = pk['w'].shape[1]
    out = pl.pallas_call(
        _mm_bias_sigmoid_kernel,
        out_shape=jax.ShapeDtypeStruct((M, Np), jnp.float32),
        grid=(1,),
        in_specs=[
            pl.BlockSpec((M, Cin), lambda i: (0, 0)),
            pl.BlockSpec((Cin, Np), lambda i: (0, 0)),
            pl.BlockSpec((1, Np), lambda i: (0, 0)),
        ],
        out_specs=pl.BlockSpec((M, Np), lambda i: (0, 0)),
    )(x.astype(jnp.bfloat16), pk['w'], pk['b'])
    return out[:, :pk['n']]


# ------------------------------ model pieces (glue + kernels) ----------------

def _im2col3x3(x):
    # TODO(synk): patch matrix is still materialized in HBM; patches are bf16
    # now (half the bytes) and weight traffic dominates the deep layers.
    Nb, H, W, C = x.shape
    xp = jnp.pad(x, ((0, 0), (1, 1), (1, 1), (0, 0)))
    cols = []
    for ky in range(3):
        for kx in range(3):
            cols.append(xp[:, ky:ky + H, kx:kx + W, :])
    p = jnp.stack(cols, axis=3)  # (N, H, W, 9, C); K-order = (ky, kx, ci)
    return p.reshape(Nb * H * W, 9 * C)


def conv3x3_bn_relu(x, pk):
    Nb, H, W, _ = x.shape
    patches = _im2col3x3(x)
    y = pallas_matmul_packed(patches, pk, epilogue='bn_relu')
    return y.reshape(Nb, H, W, pk['n'])


def double_conv(x, p):
    x = conv3x3_bn_relu(x, p['c1'])
    return conv3x3_bn_relu(x, p['c2'])


def conv_transpose2x2(x, pk):
    """ConvTranspose2d(kernel=2, stride=2) on NHWC input."""
    Nb, H, W, Cin = x.shape
    Cout = pk['cout']
    y = pallas_matmul_packed(x.reshape(-1, Cin), pk, epilogue='bias')  # (M, 4*Cout)
    y = y.reshape(Nb, H, W, 2, 2, Cout)
    y = jnp.transpose(y, (0, 1, 3, 2, 4, 5)).reshape(Nb, 2 * H, 2 * W, Cout)
    return y


def _center_pad_or_crop(x1, Ht, Wt):
    """F.pad([dX//2, dX-dX//2, dY//2, dY-dY//2]) — negative values crop."""
    diffY = Ht - x1.shape[1]
    diffX = Wt - x1.shape[2]
    top, bottom = diffY // 2, diffY - diffY // 2
    left, right = diffX // 2, diffX - diffX // 2
    return jax.lax.pad(
        x1, jnp.zeros((), x1.dtype),
        [(0, 0, 0), (top, bottom, 0), (left, right, 0), (0, 0, 0)])


def up_block(x1, x2, p):
    x1 = conv_transpose2x2(x1, p['up'])
    x1 = _center_pad_or_crop(x1, x2.shape[1], x2.shape[2])
    x = jnp.concatenate([x2, x1], axis=-1)  # skip (x2) channels first, like torch
    return double_conv(x, p['dc'])


def terminator_forward(x_nchw, pp):
    # Activations flow as bf16 NHWC end-to-end; all matmul accumulation is f32.
    x = jnp.transpose(x_nchw, (0, 2, 3, 1)).astype(jnp.bfloat16)  # NCHW -> NHWC
    x1 = double_conv(x, pp['first'])
    x2 = double_conv(x1, pp['second'])
    x3 = double_conv(pallas_maxpool2(x2), pp['first_down'])
    x4 = double_conv(x3, pp['third'])
    x5 = double_conv(pallas_maxpool2(x4), pp['second_down'])
    x6 = double_conv(x5, pp['fourth'])
    x7 = double_conv(pallas_maxpool2(x6), pp['third_down'])
    x6b = up_block(x7, x6, pp['up1'])
    x5b = up_block(x6b, x5, pp['up2'])
    x4b = up_block(x5b, x4, pp['up3'])
    x3b = up_block(x4b, x3, pp['up4'])
    x2b = up_block(x3b, x2, pp['up5'])
    Nb, H, W, C = x2b.shape
    out = pallas_conv1x1_sigmoid(x2b.reshape(-1, C), pp['outc'])
    out = out.reshape(Nb, H, W, -1)
    return jnp.transpose(out, (0, 3, 1, 2))  # back to NCHW, f32


# ------------------------------ one-time weight packing ----------------------

def _quantize_cols(wm):
    """Per-output-channel symmetric int8 quantization of a (K, N) matrix."""
    absmax = jnp.max(jnp.abs(wm), axis=0, keepdims=True)
    scale = jnp.where(absmax > 0, absmax / 127.0, 1.0).astype(jnp.float32)
    q = jnp.clip(jnp.round(wm / scale), -127, 127).astype(jnp.int8)
    return q, scale


def _pack_matrix(wm, K, N):
    """Pad a (K, N) f32 matrix to the 128 grid; int8-quantize the big ones.

    Padded rows/columns are exactly zero (invariant relied upon by the fused
    BN epilogue: padded channels stay identically 0)."""
    Kp, Np = _round_up(K, 128), _round_up(N, 128)
    wm = jnp.pad(wm, ((0, Kp - K), (0, Np - N)))
    if _QUANT_WEIGHTS and K * N >= _QUANT_MIN_ELEMS:
        wq, scale = _quantize_cols(wm)          # int8 + per-column f32 scale
    else:
        wq = wm.astype(jnp.bfloat16)
        scale = jnp.ones((1, Np), jnp.float32)
    return wq, scale, Kp, Np


def _pack_conv3x3(w, g, be):
    """(Cout,Cin,3,3) -> (Kp, Np) weight matrix + padded f32 scale/gamma/beta.

    The conv bias is intentionally not packed: it cancels in training-mode BN."""
    Cout, Cin = w.shape[0], w.shape[1]
    K = 9 * Cin
    wm = jnp.transpose(w, (2, 3, 1, 0)).reshape(K, Cout)   # rows: (ky, kx, ci)
    wq, s, Kp, Np = _pack_matrix(wm, K, Cout)
    gp = jnp.pad(g, (0, Np - Cout)).reshape(1, Np).astype(jnp.float32)
    bep = jnp.pad(be, (0, Np - Cout)).reshape(1, Np).astype(jnp.float32)
    return dict(w=wq, s=s, g=gp, be=bep, n=Cout,
                tk=_choose_tile(Kp, 2048), tn=_choose_tn(Np))


def _pack_convT(w, b):
    """(Cin,Cout,2,2) -> (Kp, Np) weight matrix, columns ordered (dy,dx,co)."""
    Cin, Cout = w.shape[0], w.shape[1]
    K, N = Cin, 4 * Cout
    wm = jnp.transpose(w, (0, 2, 3, 1)).reshape(K, N)
    wq, s, Kp, Np = _pack_matrix(wm, K, N)
    bm = jnp.pad(jnp.tile(b, 4), (0, Np - N)).reshape(1, Np).astype(jnp.float32)
    return dict(w=wq, s=s, b=bm, n=N, cout=Cout,
                tk=_choose_tile(Kp, 2048), tn=_choose_tn(Np))


def _pack_outc(w, b):
    """(n_classes, 64, 1, 1) -> (Cin, 128) bf16 weight (lane-dense output)."""
    nc, Cin = w.shape[0], w.shape[1]
    Np = _round_up(nc, 128)
    wm = jnp.transpose(w, (2, 3, 1, 0)).reshape(Cin, nc)
    wm = jnp.pad(wm, ((0, 0), (0, Np - nc))).astype(jnp.bfloat16)
    bm = jnp.pad(b, (0, Np - nc)).reshape(1, Np).astype(jnp.float32)
    return dict(w=wm, b=bm, n=nc)


def prepack_terminator(raw):
    def pack_dc(d):
        return dict(c1=_pack_conv3x3(d['w1'], d['g1'], d['be1']),
                    c2=_pack_conv3x3(d['w2'], d['g2'], d['be2']))
    pp = {}
    for name in ('first', 'second', 'first_down', 'third',
                 'second_down', 'fourth', 'third_down'):
        pp[name] = pack_dc(raw[name])
    for name in ('up1', 'up2', 'up3', 'up4', 'up5'):
        pp[name] = dict(up=_pack_convT(raw[name]['wt'], raw[name]['bt']),
                        dc=pack_dc(raw[name]['dc']))
    pp['outc'] = _pack_outc(raw['outc']['w'], raw['outc']['b'])
    return pp


# ------------------------------ deterministic init ---------------------------

def _init_conv(key, cin, cout, k):
    wkey, bkey = jax.random.split(key)
    std = 1.0 / np.sqrt(cin * k * k)
    w = jax.random.uniform(wkey, (cout, cin, k, k), jnp.float32, -std, std)
    b = jax.random.uniform(bkey, (cout,), jnp.float32, -std, std)
    return w, b


def _init_convT(key, cin, cout, k=2):
    wkey, bkey = jax.random.split(key)
    std = 1.0 / np.sqrt(cout * k * k)
    w = jax.random.uniform(wkey, (cin, cout, k, k), jnp.float32, -std, std)
    b = jax.random.uniform(bkey, (cout,), jnp.float32, -std, std)
    return w, b


def _init_double_conv(key, cin, cout, mid=None):
    if mid is None:
        mid = cout
    k1, k2 = jax.random.split(key)
    w1, b1 = _init_conv(k1, cin, mid, 3)
    w2, b2 = _init_conv(k2, mid, cout, 3)
    # conv biases (b1/b2) are kept to mirror the torch module but are not used:
    # they cancel exactly under training-mode BatchNorm.
    return dict(w1=w1, b1=b1, g1=jnp.ones((mid,), jnp.float32),
                be1=jnp.zeros((mid,), jnp.float32),
                w2=w2, b2=b2, g2=jnp.ones((cout,), jnp.float32),
                be2=jnp.zeros((cout,), jnp.float32))


def _init_up(key, cin, cout):
    k1, k2 = jax.random.split(key)
    wt, bt = _init_convT(k1, cin, cin // 2)
    return dict(wt=wt, bt=bt, dc=_init_double_conv(k2, cin, cout))


def init_terminator(key, n_channels, n_classes):
    ks = jax.random.split(key, 13)
    p = {}
    p['first'] = _init_double_conv(ks[0], n_channels, 32, 16)
    p['second'] = _init_double_conv(ks[1], 32, 64)
    p['first_down'] = _init_double_conv(ks[2], 64, 128)
    p['third'] = _init_double_conv(ks[3], 128, 256)
    p['second_down'] = _init_double_conv(ks[4], 256, 512)
    p['fourth'] = _init_double_conv(ks[5], 512, 1024)
    p['third_down'] = _init_double_conv(ks[6], 1024, 2048)
    p['up1'] = _init_up(ks[7], 2048, 1024)   # bilinear=False -> factor=1
    p['up2'] = _init_up(ks[8], 1024, 512)
    p['up3'] = _init_up(ks[9], 512, 256)
    p['up4'] = _init_up(ks[10], 256, 128)
    p['up5'] = _init_up(ks[11], 128, 64)
    wo, bo = _init_conv(ks[12], 64, n_classes, 1)
    p['outc'] = dict(w=wo, b=bo)
    return p


# ------------------------------ main ------------------------------

if __name__ == "__main__":
    key = jax.random.PRNGKey(0)
    pkey, xkey = jax.random.split(key)
    n_channels, n_classes = 4, 3
    raw_params = init_terminator(pkey, n_channels, n_classes)
    params = prepack_terminator(raw_params)   # one-time: transpose/pad/quantize
    params = jax.block_until_ready(params)
    x = jax.random.normal(xkey, (2, n_channels, 16, 16), jnp.float32)
    out = terminator_forward(x, params)
    out = jax.block_until_ready(out)
    assert out.shape == (2, n_classes, 16, 16), out.shape
    assert bool(jnp.all(jnp.isfinite(out)))
    assert bool(jnp.all((out >= 0.0) & (out <= 1.0)))  # sigmoid range
    print("KERNEL_OK")
</pallas_src>

<mosaic_0001>
module attributes {stable_mosaic.version = 11 : i64} {
  func.func @_mm_bn_relu_kernel(%arg0: i32, %arg1: i32, %arg2: memref<512x128xbf16, #tpu.memory_space<vmem>>, %arg3: memref<128x128xbf16, #tpu.memory_space<vmem>>, %arg4: memref<1x128xf32, #tpu.memory_space<vmem>>, %arg5: memref<1x128xf32, #tpu.memory_space<vmem>>, %arg6: memref<1x128xf32, #tpu.memory_space<vmem>>, %arg7: memref<512x128xbf16, #tpu.memory_space<vmem>>, %arg8: memref<512x128xf32, #tpu.memory_space<vmem>>) attributes {dimension_semantics = [#tpu.dimension_semantics<parallel>, #tpu.dimension_semantics<arbitrary>], iteration_bounds = array<i64: 1, 1>, scalar_prefetch = 0 : i64, scratch_operands = 1 : i64, tpu.core_type = #tpu.core_type<tc>, window_params = [{transform_indices = @transform_0, window_bounds = array<i64: 512, 128>}, {transform_indices = @transform_1, window_bounds = array<i64: 128, 128>}, {transform_indices = @transform_2, window_bounds = array<i64: 1, 128>}, {transform_indices = @transform_3, window_bounds = array<i64: 1, 128>}, {transform_indices = @transform_4, window_bounds = array<i64: 1, 128>}, {transform_indices = @transform_5, window_bounds = array<i64: 512, 128>}]} {
    %c0_i32 = arith.constant 0 : i32
    %0 = arith.cmpi eq, %arg1, %c0_i32 : i32
    %1 = arith.extui %0 : i1 to i32
    %c0_i32_0 = arith.constant 0 : i32
    %2 = arith.cmpi ne, %1, %c0_i32_0 : i32
    scf.if %2 {
      %cst_10 = arith.constant 0.000000e+00 : f32
      %12 = vector.broadcast %cst_10 : f32 to vector<512x128xf32>
      %c0_11 = arith.constant 0 : index
      %c0_12 = arith.constant 0 : index
      %13 = vector.load %arg8[%c0_11, %c0_12] : memref<512x128xf32, #tpu.memory_space<vmem>>, vector<512x128xf32>
      tpu.vector_store %arg8[%c0_11, %c0_12], %12 {strides = array<i32>} : memref<512x128xf32, #tpu.memory_space<vmem>>, vector<512x128xf32>,
    } else {
    }
    %c0 = arith.constant 0 : index
    %c0_1 = arith.constant 0 : index
    %3 = vector.load %arg8[%c0, %c0_1] : memref<512x128xf32, #tpu.memory_space<vmem>>, vector<512x128xf32>
    %c0_2 = arith.constant 0 : index
    %c0_3 = arith.constant 0 : index
    %4 = vector.load %arg2[%c0_2, %c0_3] : memref<512x128xbf16, #tpu.memory_space<vmem>>, vector<512x128xbf16>
    %c0_4 = arith.constant 0 : index
    %c0_5 = arith.constant 0 : index
    %5 = vector.load %arg3[%c0_4, %c0_5] : memref<128x128xbf16, #tpu.memory_space<vmem>>, vector<128x128xbf16>
    %cst = arith.constant dense<0.000000e+00> : vector<512x128xf32>
    %6 = tpu.matmul %4, %5, %cst {dimension_numbers = #tpu.dot_dimension_numbers<[1], [0], [0], [1], [0, 0, 1, 1], [], []>} : vector<512x128xbf16>, vector<128x128xbf16>, vector<512x128xf32> -> vector<512x128xf32>
    %7 = arith.addf %3, %6 : vector<512x128xf32>
    %c0_6 = arith.constant 0 : index
    %c0_7 = arith.constant 0 : index
    %8 = vector.load %arg8[%c0_6, %c0_7] : memref<512x128xf32, #tpu.memory_space<vmem>>, vector<512x128xf32>
    tpu.vector_store %arg8[%c0_6, %c0_7], %7 {strides = array<i32>} : memref<512x128xf32, #tpu.memory_space<vmem>>, vector<512x128xf32>,
    %c0_i32_8 = arith.constant 0 : i32
    %9 = arith.cmpi eq, %arg1, %c0_i32_8 : i32
    %10 = arith.extui %9 : i1 to i32
    %c0_i32_9 = arith.constant 0 : i32
    %11 = arith.cmpi ne, %10, %c0_i32_9 : i32
    scf.if %11 {
      %c0_10 = arith.constant 0 : index
      %c0_11 = arith.constant 0 : index
      %12 = vector.load %arg8[%c0_10, %c0_11] : memref<512x128xf32, #tpu.memory_space<vmem>>, vector<512x128xf32>
      %c0_12 = arith.constant 0 : index
      %c0_13 = arith.constant 0 : index
      %13 = vector.load %arg4[%c0_12, %c0_13] : memref<1x128xf32, #tpu.memory_space<vmem>>, vector<1x128xf32>
      %14 = vector.broadcast %13 : vector<1x128xf32> to vector<512x128xf32>
      %15 = arith.mulf %12, %14 : vector<512x128xf32>
      %cst_14 = arith.constant dense<0.000000e+00> : vector<128xf32>
      %16 = vector.multi_reduction <add>, %15, %cst_14 [0] : vector<512x128xf32> to vector<128xf32>
      %17 = vector.shape_cast %16 : vector<128xf32> to vector<1x128xf32>
      %cst_15 = arith.constant 0.001953125 : f32
      %18 = vector.broadcast %cst_15 : f32 to vector<1x128xf32>
      %19 = arith.mulf %17, %18 : vector<1x128xf32>
      %20 = arith.mulf %15, %15 : vector<512x128xf32>
      %cst_16 = arith.constant dense<0.000000e+00> : vector<128xf32>
      %21 = vector.multi_reduction <add>, %20, %cst_16 [0] : vector<512x128xf32> to vector<128xf32>
      %22 = vector.shape_cast %21 : vector<128xf32> to vector<1x128xf32>
      %cst_17 = arith.constant 0.001953125 : f32
      %23 = vector.broadcast %cst_17 : f32 to vector<1x128xf32>
      %24 = arith.mulf %22, %23 : vector<1x128xf32>
      %25 = arith.mulf %19, %19 : vector<1x128xf32>
      %26 = arith.subf %24, %25 : vector<1x128xf32>
      %cst_18 = arith.constant 9.99999974E-6 : f32
      %27 = vector.broadcast %cst_18 : f32 to vector<1x128xf32>
      %28 = arith.addf %26, %27 : vector<1x128xf32>
      %29 = math.rsqrt %28 : vector<1x128xf32>
      %c0_19 = arith.constant 0 : index
      %c0_20 = arith.constant 0 : index
      %30 = vector.load %arg5[%c0_19, %c0_20] : memref<1x128xf32, #tpu.memory_space<vmem>>, vector<1x128xf32>
      %31 = arith.mulf %29, %30 : vector<1x128xf32>
      %32 = vector.broadcast %19 : vector<1x128xf32> to vector<512x128xf32>
      %33 = arith.subf %15, %32 : vector<512x128xf32>
      %34 = vector.broadcast %31 : vector<1x128xf32> to vector<512x128xf32>
      %35 = arith.mulf %33, %34 : vector<512x128xf32>
      %c0_21 = arith.constant 0 : index
      %c0_22 = arith.constant 0 : index
      %36 = vector.load %arg6[%c0_21, %c0_22] : memref<1x128xf32, #tpu.memory_space<vmem>>, vector<1x128xf32>
      %37 = vector.broadcast %36 : vector<1x128xf32> to vector<512x128xf32>
      %38 = arith.addf %35, %37 : vector<512x128xf32>
      %cst_23 = arith.constant 0.000000e+00 : f32
      %39 = vector.broadcast %cst_23 : f32 to vector<512x128xf32>
      %40 = arith.maximumf %38, %39 : vector<512x128xf32>
      %41 = arith.truncf %40 : vector<512x128xf32> to vector<512x128xbf16>
      %c0_24 = arith.constant 0 : index
      %c0_25 = arith.constant 0 : index
      %42 = vector.load %arg7[%c0_24, %c0_25] : memref<512x128xbf16, #tpu.memory_space<vmem>>, vector<512x128xbf16>
      tpu.vector_store %arg7[%c0_24, %c0_25], %41 {strides = array<i32>} : memref<512x128xbf16, #tpu.memory_space<vmem>>, vector<512x128xbf16>,
    } else {
    }
    return
  }
  func.func @transform_0(%arg0: i32, %arg1: i32) -> (i32, i32) {
    %c0_i32 = arith.constant 0 : i32
    %c0_i32_0 = arith.constant 0 : i32
    return %c0_i32, %arg1 : i32, i32
  }
  func.func @transform_1(%arg0: i32, %arg1: i32) -> (i32, i32) {
    %c0_i32 = arith.constant 0 : i32
    return %arg1, %arg0 : i32, i32
  }
  func.func @transform_2(%arg0: i32, %arg1: i32) -> (i32, i32) {
    %c0_i32 = arith.constant 0 : i32
    %c0_i32_0 = arith.constant 0 : i32
    return %c0_i32, %arg0 : i32, i32
  }
  func.func @transform_3(%arg0: i32, %arg1: i32) -> (i32, i32) {
    %c0_i32 = arith.constant 0 : i32
    %c0_i32_0 = arith.constant 0 : i32
    return %c0_i32, %arg0 : i32, i32
  }
  func.func @transform_4(%arg0: i32, %arg1: i32) -> (i32, i32) {
    %c0_i32 = arith.constant 0 : i32
    %c0_i32_0 = arith.constant 0 : i32
    return %c0_i32, %arg0 : i32, i32
  }
  func.func @transform_5(%arg0: i32, %arg1: i32) -> (i32, i32) {
    %c0_i32 = arith.constant 0 : i32
    %c0_i32_0 = arith.constant 0 : i32
    return %c0_i32, %arg0 : i32, i32
  }
}

</mosaic_0001>

<llo_original>
// kernel: tpu_custom_call.1
$region0: #{tpu_custom_call.1}
  #allocation0 [shape = 'u32[]', space=smem, size = 0x4, offset = 0x4, fixed_abs, tag = 'smem constant byte address 0x4 - core index']
  #allocation1 [shape = 'u32[72,128]{1,0:T(1,128)}', space=vmem, size = 0x9000, scoped, tag = 'internal scratch']
  #allocation2 [shape = 'f32[512,128]{1,0:T(8,128)}', space=vmem, size = 0x40000, scoped, tag = 'scratch operand']
  %s0 = inlined_call_operand.hbm [shape: bf16[512,128], index: 0, kind: input, shape index: {}]
  %s1 = inlined_call_operand.hbm [shape: bf16[128,128], index: 1, kind: input, shape index: {}]
  %s2 = inlined_call_operand.vmem [shape: f32[1,128], index: 2, kind: input, shape index: {}]
  %s3 = inlined_call_operand.vmem [shape: f32[1,128], index: 3, kind: input, shape index: {}]
  %s4 = inlined_call_operand.vmem [shape: f32[1,128], index: 4, kind: input, shape index: {}]
  %s5 = inlined_call_operand.hbm [shape: bf16[512,128], index: 5, kind: output, shape index: {}]
  %s6 = sld [smem:[#allocation0]]
  $region46: #{tpu_custom_call.1} parent=0
    _
  %s8 = ssub.s32 1, %s6
  %s9 = scalar_select 0, %s8, %s6
  $region1: #{tpu_custom_call.1} parent=0
    #allocation3 [shape = 'u8[131072]{0}', space=vmem, size = 0x20000, scoped, tag = 'input window, operand 0, single buffered']
    #allocation4 [shape = 's32[1]{0}', space=sflag, size = 0x4, scoped, tag = 'scoped memory for tpu_custom_call.1']
    #allocation5 [shape = 's32[1]{0}', space=sflag, size = 0x4, scoped, tag = 'scoped memory for tpu_custom_call.1']
    #allocation6 [shape = 'u8[32768]{0}', space=vmem, size = 0x8000, scoped, tag = 'input window, operand 1, single buffered']
    #allocation7 [shape = 's32[1]{0}', space=sflag, size = 0x4, scoped, tag = 'scoped memory for tpu_custom_call.1']
    #allocation8 [shape = 'u8[131072]{0}', space=vmem, size = 0x20000, scoped, tag = 'output window, operand 0, single buffered']
    %10 = vsyncpa [#allocation4], 0
    %11 = vsyncpa [#allocation7], 0
    %12 = vsyncpa [#allocation5], 0
    // Predicated region
    $region2: #{tpu_custom_call.1} parent=1 // pred_check
      _
    $region3: #{tpu_custom_call.1} parent=1 // pred_check_branch
      %14 = sbr.rel (0) target = $region5
    $region4: #{tpu_custom_call.1} parent=1 // pred_region
      %16 = vsyncadd [#allocation4], 0
      %s17 = sshll.u32 %s0, 4
      %s18 = int_to_ptr.hbm [resolvable:$true] %s17
      %s19 = sshll.u32 [#allocation3], 4
      %s20 = int_to_ptr.vmem [resolvable:$true] %s19
      %25 = dma.hbm_to_vmem [thread:$0]  %s18, 4096, %s20, [#allocation4], 64, 64, 4
    $region5: #{tpu_custom_call.1} parent=1 // pred_fallthru
      _
    // Predicated region
    $region6: #{tpu_custom_call.1} parent=1 // pred_check
      _
    $region7: #{tpu_custom_call.1} parent=1 // pred_check_branch
      %27 = sbr.rel (0) target = $region9
    $region8: #{tpu_custom_call.1} parent=1 // pred_region
      %29 = vsyncadd [#allocation7], 0
      %s30 = sshll.u32 %s1, 4
      %s31 = int_to_ptr.hbm [resolvable:$true] %s30
      %s32 = sshll.u32 [#allocation6], 4
      %s33 = int_to_ptr.vmem [resolvable:$true] %s32
      %38 = dma.hbm_to_vmem [thread:$0]  %s31, 1024, %s33, [#allocation7], 64, 64, 4
    $region9: #{tpu_custom_call.1} parent=1 // pred_fallthru
      _
    // Predicated region
    $region10: #{tpu_custom_call.1} parent=1 // pred_check
      _
    $region11: #{tpu_custom_call.1} parent=1 // pred_check_branch
      %40 = sbr.rel (0) target = $region13
    $region12: #{tpu_custom_call.1} parent=1 // pred_region
      _
    $region13: #{tpu_custom_call.1} parent=1 // pred_fallthru
      _
    // Predicated region
    $region14: #{tpu_custom_call.1} parent=1 // pred_check
      _
    $region15: #{tpu_custom_call.1} parent=1 // pred_check_branch
      %42 = sbr.rel (0) target = $region17
    $region16: #{tpu_custom_call.1} parent=1 // pred_region
      _
    $region17: #{tpu_custom_call.1} parent=1 // pred_fallthru
      _
    // Predicated region
    $region18: #{tpu_custom_call.1} parent=1 // pred_check
      _
    $region19: #{tpu_custom_call.1} parent=1 // pred_check_branch
      %44 = sbr.rel (0) target = $region21
    $region20: #{tpu_custom_call.1} parent=1 // pred_region
      _
    $region21: #{tpu_custom_call.1} parent=1 // pred_fallthru
      _
    // Predicated region
    $region22: #{tpu_custom_call.1} parent=1 // pred_check
      _
    $region23: #{tpu_custom_call.1} parent=1 // pred_check_branch
      %46 = sbr.rel (0) target = $region25
    $region24: #{tpu_custom_call.1} parent=1 // pred_region
      %48 = dma.done [#allocation4], 4096
    $region25: #{tpu_custom_call.1} parent=1 // pred_fallthru
      _
    // Predicated region
    $region26: #{tpu_custom_call.1} parent=1 // pred_check
      _
    $region27: #{tpu_custom_call.1} parent=1 // pred_check_branch
      %50 = sbr.rel (0) target = $region29
    $region28: #{tpu_custom_call.1} parent=1 // pred_region
      %52 = dma.done [#allocation7], 1024
    $region29: #{tpu_custom_call.1} parent=1 // pred_fallthru
      _
    %p53 = scmp.eq.s32.totalorder 0, 0
    // Predicated region
    $region30: #{tpu_custom_call.1} parent=1 // pred_check
      %p54 = pneg %p53
    $region31: #{tpu_custom_call.1} parent=1 // pred_check_branch
      %56 = sbr.rel (%p54) target = $region33
    $region32: #{tpu_custom_call.1} parent=1 // pred_region
      %57 = vst [vmem:[#allocation2] sm:$0xff] 0.0
      %58 = vst [vmem:[#allocation2 + $0x8] sm:$0xff] 0.0
      %59 = vst [vmem:[#allocation2 + $0x10] sm:$0xff] 0.0
      %60 = vst [vmem:[#allocation2 + $0x18] sm:$0xff] 0.0
      %61 = vst [vmem:[#allocation2 + $0x20] sm:$0xff] 0.0
      %62 = vst [vmem:[#allocation2 + $0x28] sm:$0xff] 0.0
      %63 = vst [vmem:[#allocation2 + $0x30] sm:$0xff] 0.0
      %64 = vst [vmem:[#allocation2 + $0x38] sm:$0xff] 0.0
      %65 = vst [vmem:[#allocation2 + $0x40] sm:$0xff] 0.0
      %66 = vst [vmem:[#allocation2 + $0x48] sm:$0xff] 0.0
      %67 = vst [vmem:[#allocation2 + $0x50] sm:$0xff] 0.0
      %68 = vst [vmem:[#allocation2 + $0x58] sm:$0xff] 0.0
      %69 = vst [vmem:[#allocation2 + $0x60] sm:$0xff] 0.0
      %70 = vst [vmem:[#allocation2 + $0x68] sm:$0xff] 0.0
      %71 = vst [vmem:[#allocation2 + $0x70] sm:$0xff] 0.0
      %72 = vst [vmem:[#allocation2 + $0x78] sm:$0xff] 0.0
      %73 = vst [vmem:[#allocation2 + $0x80] sm:$0xff] 0.0
      %74 = vst [vmem:[#allocation2 + $0x88] sm:$0xff] 0.0
      %75 = vst [vmem:[#allocation2 + $0x90] sm:$0xff] 0.0
      %76 = vst [vmem:[#allocation2 + $0x98] sm:$0xff] 0.0
      %77 = vst [vmem:[#allocation2 + $0xa0] sm:$0xff] 0.0
      %78 = vst [vmem:[#allocation2 + $0xa8] sm:$0xff] 0.0
      %79 = vst [vmem:[#allocation2 + $0xb0] sm:$0xff] 0.0
      %80 = vst [vmem:[#allocation2 + $0xb8] sm:$0xff] 0.0
      %81 = vst [vmem:[#allocation2 + $0xc0] sm:$0xff] 0.0
      %82 = vst [vmem:[#allocation2 + $0xc8] sm:$0xff] 0.0
      %83 = vst [vmem:[#allocation2 + $0xd0] sm:$0xff] 0.0
      %84 = vst [vmem:[#allocation2 + $0xd8] sm:$0xff] 0.0
      %85 = vst [vmem:[#allocation2 + $0xe0] sm:$0xff] 0.0
      %86 = vst [vmem:[#allocation2 + $0xe8] sm:$0xff] 0.0
      %87 = vst [vmem:[#allocation2 + $0xf0] sm:$0xff] 0.0
      %88 = vst [vmem:[#allocation2 + $0xf8] sm:$0xff] 0.0
      %89 = vst [vmem:[#allocation2 + $0x100] sm:$0xff] 0.0
      %90 = vst [vmem:[#allocation2 + $0x108] sm:$0xff] 0.0
      %91 = vst [vmem:[#allocation2 + $0x110] sm:$0xff] 0.0
      %92 = vst [vmem:[#allocation2 + $0x118] sm:$0xff] 0.0
      %93 = vst [vmem:[#allocation2 + $0x120] sm:$0xff] 0.0
      %94 = vst [vmem:[#allocation2 + $0x128] sm:$0xff] 0.0
      %95 = vst [vmem:[#allocation2 + $0x130] sm:$0xff] 0.0
      %96 = vst [vmem:[#allocation2 + $0x138] sm:$0xff] 0.0
      %97 = vst [vmem:[#allocation2 + $0x140] sm:$0xff] 0.0
      %98 = vst [vmem:[#allocation2 + $0x148] sm:$0xff] 0.0
      %99 = vst [vmem:[#allocation2 + $0x150] sm:$0xff] 0.0
      %100 = vst [vmem:[#allocation2 + $0x158] sm:$0xff] 0.0
      %101 = vst [vmem:[#allocation2 + $0x160] sm:$0xff] 0.0
      %102 = vst [vmem:[#allocation2 + $0x168] sm:$0xff] 0.0
      %103 = vst [vmem:[#allocation2 + $0x170] sm:$0xff] 0.0
      %104 = vst [vmem:[#allocation2 + $0x178] sm:$0xff] 0.0
      %105 = vst [vmem:[#allocation2 + $0x180] sm:$0xff] 0.0
      %106 = vst [vmem:[#allocation2 + $0x188] sm:$0xff] 0.0
      %107 = vst [vmem:[#allocation2 + $0x190] sm:$0xff] 0.0
      %108 = vst [vmem:[#allocation2 + $0x198] sm:$0xff] 0.0
      %109 = vst [vmem:[#allocation2 + $0x1a0] sm:$0xff] 0.0
      %110 = vst [vmem:[#allocation2 + $0x1a8] sm:$0xff] 0.0
      %111 = vst [vmem:[#allocation2 + $0x1b0] sm:$0xff] 0.0
      %112 = vst [vmem:[#allocation2 + $0x1b8] sm:$0xff] 0.0
      %113 = vst [vmem:[#allocation2 + $0x1c0] sm:$0xff] 0.0
      %114 = vst [vmem:[#allocation2 + $0x1c8] sm:$0xff] 0.0
      %115 = vst [vmem:[#allocation2 + $0x1d0] sm:$0xff] 0.0
      %116 = vst [vmem:[#allocation2 + $0x1d8] sm:$0xff] 0.0
      %117 = vst [vmem:[#allocation2 + $0x1e0] sm:$0xff] 0.0
      %118 = vst [vmem:[#allocation2 + $0x1e8] sm:$0xff] 0.0
      %119 = vst [vmem:[#allocation2 + $0x1f0] sm:$0xff] 0.0
      %120 = vst [vmem:[#allocation2 + $0x1f8] sm:$0xff] 0.0
    $region33: #{tpu_custom_call.1} parent=1 // pred_fallthru
      _
    %v121 = vld [vmem:[#allocation2] sm:$0xff]
    %v122 = vld [vmem:[#allocation2 + $0x8] sm:$0xff]
    %v123 = vld [vmem:[#allocation2 + $0x10] sm:$0xff]
    %v124 = vld [vmem:[#allocation2 + $0x18] sm:$0xff]
    %v125 = vld [vmem:[#allocation2 + $0x20] sm:$0xff]
    %v126 = vld [vmem:[#allocation2 + $0x28] sm:$0xff]
    %v127 = vld [vmem:[#allocation2 + $0x30] sm:$0xff]
    %v128 = vld [vmem:[#allocation2 + $0x38] sm:$0xff]
    %v129 = vld [vmem:[#allocation2 + $0x40] sm:$0xff]
    %v130 = vld [vmem:[#allocation2 + $0x48] sm:$0xff]
    %v131 = vld [vmem:[#allocation2 + $0x50] sm:$0xff]
    %v132 = vld [vmem:[#allocation2 + $0x58] sm:$0xff]
    %v133 = vld [vmem:[#allocation2 + $0x60] sm:$0xff]
    %v134 = vld [vmem:[#allocation2 + $0x68] sm:$0xff]
    %v135 = vld [vmem:[#allocation2 + $0x70] sm:$0xff]
    %v136 = vld [vmem:[#allocation2 + $0x78] sm:$0xff]
    %v137 = vld [vmem:[#allocation2 + $0x80] sm:$0xff]
    %v138 = vld [vmem:[#allocation2 + $0x88] sm:$0xff]
    %v139 = vld [vmem:[#allocation2 + $0x90] sm:$0xff]
    %v140 = vld [vmem:[#allocation2 + $0x98] sm:$0xff]
    %v141 = vld [vmem:[#allocation2 + $0xa0] sm:$0xff]
    %v142 = vld [vmem:[#allocation2 + $0xa8] sm:$0xff]
    %v143 = vld [vmem:[#allocation2 + $0xb0] sm:$0xff]
    %v144 = vld [vmem:[#allocation2 + $0xb8] sm:$0xff]
    %v145 = vld [vmem:[#allocation2 + $0xc0] sm:$0xff]
    %v146 = vld [vmem:[#allocation2 + $0xc8] sm:$0xff]
    %v147 = vld [vmem:[#allocation2 + $0xd0] sm:$0xff]
    %v148 = vld [vmem:[#allocation2 + $0xd8] sm:$0xff]
    %v149 = vld [vmem:[#allocation2 + $0xe0] sm:$0xff]
    %v150 = vld [vmem:[#allocation2 + $0xe8] sm:$0xff]
    %v151 = vld [vmem:[#allocation2 + $0xf0] sm:$0xff]
    %v152 = vld [vmem:[#allocation2 + $0xf8] sm:$0xff]
    %v153 = vld [vmem:[#allocation2 + $0x100] sm:$0xff]
    %v154 = vld [vmem:[#allocation2 + $0x108] sm:$0xff]
    %v155 = vld [vmem:[#allocation2 + $0x110] sm:$0xff]
    %v156 = vld [vmem:[#allocation2 + $0x118] sm:$0xff]
    %v157 = vld [vmem:[#allocation2 + $0x120] sm:$0xff]
    %v158 = vld [vmem:[#allocation2 + $0x128] sm:$0xff]
    %v159 = vld [vmem:[#allocation2 + $0x130] sm:$0xff]
    %v160 = vld [vmem:[#allocation2 + $0x138] sm:$0xff]
    %v161 = vld [vmem:[#allocation2 + $0x140] sm:$0xff]
    %v162 = vld [vmem:[#allocation2 + $0x148] sm:$0xff]
    %v163 = vld [vmem:[#allocation2 + $0x150] sm:$0xff]
    %v164 = vld [vmem:[#allocation2 + $0x158] sm:$0xff]
    %v165 = vld [vmem:[#allocation2 + $0x160] sm:$0xff]
    %v166 = vld [vmem:[#allocation2 + $0x168] sm:$0xff]
    %v167 = vld [vmem:[#allocation2 + $0x170] sm:$0xff]
    %v168 = vld [vmem:[#allocation2 + $0x178] sm:$0xff]
    %v169 = vld [vmem:[#allocation2 + $0x180] sm:$0xff]
    %v170 = vld [vmem:[#allocation2 + $0x188] sm:$0xff]
    %v171 = vld [vmem:[#allocation2 + $0x190] sm:$0xff]
    %v172 = vld [vmem:[#allocation2 + $0x198] sm:$0xff]
    %v173 = vld [vmem:[#allocation2 + $0x1a0] sm:$0xff]
    %v174 = vld [vmem:[#allocation2 + $0x1a8] sm:$0xff]
    %v175 = vld [vmem:[#allocation2 + $0x1b0] sm:$0xff]
    %v176 = vld [vmem:[#allocation2 + $0x1b8] sm:$0xff]
    %v177 = vld [vmem:[#allocation2 + $0x1c0] sm:$0xff]
    %v178 = vld [vmem:[#allocation2 + $0x1c8] sm:$0xff]
    %v179 = vld [vmem:[#allocation2 + $0x1d0] sm:$0xff]
    %v180 = vld [vmem:[#allocation2 + $0x1d8] sm:$0xff]
    %v181 = vld [vmem:[#allocation2 + $0x1e0] sm:$0xff]
    %v182 = vld [vmem:[#allocation2 + $0x1e8] sm:$0xff]
    %v183 = vld [vmem:[#allocation2 + $0x1f0] sm:$0xff]
    %v184 = vld [vmem:[#allocation2 + $0x1f8] sm:$0xff]
    %v185 = vld [vmem:[#allocation3] sm:$0xf]
    %v186 = vld [vmem:[#allocation3 + $0x4] sm:$0xf]
    %v187 = vld [vmem:[#allocation3 + $0x8] sm:$0xf]
    %v188 = vld [vmem:[#allocation3 + $0xc] sm:$0xf]
    %v189 = vld [vmem:[#allocation3 + $0x10] sm:$0xf]
    %v190 = vld [vmem:[#allocation3 + $0x14] sm:$0xf]
    %v191 = vld [vmem:[#allocation3 + $0x18] sm:$0xf]
    %v192 = vld [vmem:[#allocation3 + $0x1c] sm:$0xf]
    %v193 = vld [vmem:[#allocation3 + $0x20] sm:$0xf]
    %v194 = vld [vmem:[#allocation3 + $0x24] sm:$0xf]
    %v195 = vld [vmem:[#allocation3 + $0x28] sm:$0xf]
    %v196 = vld [vmem:[#allocation3 + $0x2c] sm:$0xf]
    %v197 = vld [vmem:[#allocation3 + $0x30] sm:$0xf]
    %v198 = vld [vmem:[#allocation3 + $0x34] sm:$0xf]
    %v199 = vld [vmem:[#allocation3 + $0x38] sm:$0xf]
    %v200 = vld [vmem:[#allocation3 + $0x3c] sm:$0xf]
    %v201 = vld [vmem:[#allocation3 + $0x40] sm:$0xf]
    %v202 = vld [vmem:[#allocation3 + $0x44] sm:$0xf]
    %v203 = vld [vmem:[#allocation3 + $0x48] sm:$0xf]
    %v204 = vld [vmem:[#allocation3 + $0x4c] sm:$0xf]
    %v205 = vld [vmem:[#allocation3 + $0x50] sm:$0xf]
    %v206 = vld [vmem:[#allocation3 + $0x54] sm:$0xf]
    %v207 = vld [vmem:[#allocation3 + $0x58] sm:$0xf]
    %v208 = vld [vmem:[#allocation3 + $0x5c] sm:$0xf]
    %v209 = vld [vmem:[#allocation3 + $0x60] sm:$0xf]
    %v210 = vld [vmem:[#allocation3 + $0x64] sm:$0xf]
    %v211 = vld [vmem:[#allocation3 + $0x68] sm:$0xf]
    %v212 = vld [vmem:[#allocation3 + $0x6c] sm:$0xf]
    %v213 = vld [vmem:[#allocation3 + $0x70] sm:$0xf]
    %v214 = vld [vmem:[#allocation3 + $0x74] sm:$0xf]
    %v215 = vld [vmem:[#allocation3 + $0x78] sm:$0xf]
    %v216 = vld [vmem:[#allocation3 + $0x7c] sm:$0xf]
    %v217 = vld [vmem:[#allocation3 + $0x80] sm:$0xf]
    %v218 = vld [vmem:[#allocation3 + $0x84] sm:$0xf]
    %v219 = vld [vmem:[#allocation3 + $0x88] sm:$0xf]
    %v220 = vld [vmem:[#allocation3 + $0x8c] sm:$0xf]
    %v221 = vld [vmem:[#allocation3 + $0x90] sm:$0xf]
    %v222 = vld [vmem:[#allocation3 + $0x94] sm:$0xf]
    %v223 = vld [vmem:[#allocation3 + $0x98] sm:$0xf]
    %v224 = vld [vmem:[#allocation3 + $0x9c] sm:$0xf]
    %v225 = vld [vmem:[#allocation3 + $0xa0] sm:$0xf]
    %v226 = vld [vmem:[#allocation3 + $0xa4] sm:$0xf]
    %v227 = vld [vmem:[#allocation3 + $0xa8] sm:$0xf]
    %v228 = vld [vmem:[#allocation3 + $0xac] sm:$0xf]
    %v229 = vld [vmem:[#allocation3 + $0xb0] sm:$0xf]
    %v230 = vld [vmem:[#allocation3 + $0xb4] sm:$0xf]
    %v231 = vld [vmem:[#allocation3 + $0xb8] sm:$0xf]
    %v232 = vld [vmem:[#allocation3 + $0xbc] sm:$0xf]
    %v233 = vld [vmem:[#allocation3 + $0xc0] sm:$0xf]
    %v234 = vld [vmem:[#allocation3 + $0xc4] sm:$0xf]
    %v235 = vld [vmem:[#allocation3 + $0xc8] sm:$0xf]
    %v236 = vld [vmem:[#allocation3 + $0xcc] sm:$0xf]
    %v237 = vld [vmem:[#allocation3 + $0xd0] sm:$0xf]
    %v238 = vld [vmem:[#allocation3 + $0xd4] sm:$0xf]
    %v239 = vld [vmem:[#allocation3 + $0xd8] sm:$0xf]
    %v240 = vld [vmem:[#allocation3 + $0xdc] sm:$0xf]
    %v241 = vld [vmem:[#allocation3 + $0xe0] sm:$0xf]
    %v242 = vld [vmem:[#allocation3 + $0xe4] sm:$0xf]
    %v243 = vld [vmem:[#allocation3 + $0xe8] sm:$0xf]
    %v244 = vld [vmem:[#allocation3 + $0xec] sm:$0xf]
    %v245 = vld [vmem:[#allocation3 + $0xf0] sm:$0xf]
    %v246 = vld [vmem:[#allocation3 + $0xf4] sm:$0xf]
    %v247 = vld [vmem:[#allocation3 + $0xf8] sm:$0xf]
    %v248 = vld [vmem:[#allocation3 + $0xfc] sm:$0xf]
    %v249 = vld [vmem:[#allocation6] sm:$0xf]
    %v250 = vld [vmem:[#allocation6 + $0x4] sm:$0xf]
    %v251 = vld [vmem:[#allocation6 + $0x8] sm:$0xf]
    %v252 = vld [vmem:[#allocation6 + $0xc] sm:$0xf]
    %v253 = vld [vmem:[#allocation6 + $0x10] sm:$0xf]
    %v254 = vld [vmem:[#allocation6 + $0x14] sm:$0xf]
    %v255 = vld [vmem:[#allocation6 + $0x18] sm:$0xf]
    %v256 = vld [vmem:[#allocation6 + $0x1c] sm:$0xf]
    %v257 = vld [vmem:[#allocation6 + $0x20] sm:$0xf]
    %v258 = vld [vmem:[#allocation6 + $0x24] sm:$0xf]
    %v259 = vld [vmem:[#allocation6 + $0x28] sm:$0xf]
    %v260 = vld [vmem:[#allocation6 + $0x2c] sm:$0xf]
    %v261 = vld [vmem:[#allocation6 + $0x30] sm:$0xf]
    %v262 = vld [vmem:[#allocation6 + $0x34] sm:$0xf]
    %v263 = vld [vmem:[#allocation6 + $0x38] sm:$0xf]
    %v264 = vld [vmem:[#allocation6 + $0x3c] sm:$0xf]
    %v329 = vunpack.c.l.b16 %v185
    %v330 = vunpack.c.l.b16 %v186
    %v331 = vunpack.c.l.b16 %v187
    %v332 = vunpack.c.l.b16 %v188
    %v333 = vunpack.c.l.b16 %v189
    %v334 = vunpack.c.l.b16 %v190
    %v335 = vunpack.c.l.b16 %v191
    %v336 = vunpack.c.l.b16 %v192
    %v337 = vunpack.c.l.b16 %v193
    %v338 = vunpack.c.l.b16 %v194
    %v339 = vunpack.c.l.b16 %v195
    %v340 = vunpack.c.l.b16 %v196
    %v341 = vunpack.c.l.b16 %v197
    %v342 = vunpack.c.l.b16 %v198
    %v343 = vunpack.c.l.b16 %v199
    %v344 = vunpack.c.l.b16 %v200
    %v345 = vunpack.c.l.b16 %v201
    %v346 = vunpack.c.l.b16 %v202
    %v347 = vunpack.c.l.b16 %v203
    %v348 = vunpack.c.l.b16 %v204
    %v349 = vunpack.c.l.b16 %v205
    %v350 = vunpack.c.l.b16 %v206
    %v351 = vunpack.c.l.b16 %v207
    %v352 = vunpack.c.l.b16 %v208
    %v353 = vunpack.c.l.b16 %v209
    %v354 = vunpack.c.l.b16 %v210
    %v355 = vunpack.c.l.b16 %v211
    %v356 = vunpack.c.l.b16 %v212
    %v357 = vunpack.c.l.b16 %v213
    %v358 = vunpack.c.l.b16 %v214
    %v359 = vunpack.c.l.b16 %v215
    %v360 = vunpack.c.l.b16 %v216
    %v361 = vunpack.c.l.b16 %v217
    %v362 = vunpack.c.l.b16 %v218
    %v363 = vunpack.c.l.b16 %v219
    %v364 = vunpack.c.l.b16 %v220
    %v365 = vunpack.c.l.b16 %v221
    %v366 = vunpack.c.l.b16 %v222
    %v367 = vunpack.c.l.b16 %v223
    %v368 = vunpack.c.l.b16 %v224
    %v369 = vunpack.c.l.b16 %v225
    %v370 = vunpack.c.l.b16 %v226
    %v371 = vunpack.c.l.b16 %v227
    %v372 = vunpack.c.l.b16 %v228
    %v373 = vunpack.c.l.b16 %v229
    %v374 = vunpack.c.l.b16 %v230
    %v375 = vunpack.c.l.b16 %v231
    %v376 = vunpack.c.l.b16 %v232
    %v377 = vunpack.c.l.b16 %v233
    %v378 = vunpack.c.l.b16 %v234
    %v379 = vunpack.c.l.b16 %v235
    %v380 = vunpack.c.l.b16 %v236
    %v381 = vunpack.c.l.b16 %v237
    %v382 = vunpack.c.l.b16 %v238
    %v383 = vunpack.c.l.b16 %v239
    %v384 = vunpack.c.l.b16 %v240
    %v385 = vunpack.c.l.b16 %v241
    %v386 = vunpack.c.l.b16 %v242
    %v387 = vunpack.c.l.b16 %v243
    %v388 = vunpack.c.l.b16 %v244
    %v389 = vunpack.c.l.b16 %v245
    %v390 = vunpack.c.l.b16 %v246
    %v391 = vunpack.c.l.b16 %v247
    %v392 = vunpack.c.l.b16 %v248
    %v393 = vpack.c.b16 %v330, %v329
    %v394 = vpack.c.b16 %v332, %v331
    %v395 = vpack.c.b16 %v334, %v333
    %v396 = vpack.c.b16 %v336, %v335
    %v397 = vpack.c.b16 %v338, %v337
    %v398 = vpack.c.b16 %v340, %v339
    %v399 = vpack.c.b16 %v342, %v341
    %v400 = vpack.c.b16 %v344, %v343
    %v401 = vpack.c.b16 %v346, %v345
    %v402 = vpack.c.b16 %v348, %v347
    %v403 = vpack.c.b16 %v350, %v349
    %v404 = vpack.c.b16 %v352, %v351
    %v405 = vpack.c.b16 %v354, %v353
    %v406 = vpack.c.b16 %v356, %v355
    %v407 = vpack.c.b16 %v358, %v357
    %v408 = vpack.c.b16 %v360, %v359
    %v409 = vpack.c.b16 %v362, %v361
    %v410 = vpack.c.b16 %v364, %v363
    %v411 = vpack.c.b16 %v366, %v365
    %v412 = vpack.c.b16 %v368, %v367
    %v413 = vpack.c.b16 %v370, %v369
    %v414 = vpack.c.b16 %v372, %v371
    %v415 = vpack.c.b16 %v374, %v373
    %v416 = vpack.c.b16 %v376, %v375
    %v417 = vpack.c.b16 %v378, %v377
    %v418 = vpack.c.b16 %v380, %v379
    %v419 = vpack.c.b16 %v382, %v381
    %v420 = vpack.c.b16 %v384, %v383
    %v421 = vpack.c.b16 %v386, %v385
    %v422 = vpack.c.b16 %v388, %v387
    %v423 = vpack.c.b16 %v390, %v389
    %v424 = vpack.c.b16 %v392, %v391
    %v473 = vunpack.c.l.b16 %v249
    %v474 = vunpack.c.l.b16 %v250
    %v475 = vunpack.c.l.b16 %v251
    %v476 = vunpack.c.l.b16 %v252
    %v477 = vunpack.c.l.b16 %v253
    %v478 = vunpack.c.l.b16 %v254
    %v479 = vunpack.c.l.b16 %v255
    %v480 = vunpack.c.l.b16 %v256
    %v481 = vunpack.c.l.b16 %v257
    %v482 = vunpack.c.l.b16 %v258
    %v483 = vunpack.c.l.b16 %v259
    %v484 = vunpack.c.l.b16 %v260
    %v485 = vunpack.c.l.b16 %v261
    %v486 = vunpack.c.l.b16 %v262
    %v487 = vunpack.c.l.b16 %v263
    %v488 = vunpack.c.l.b16 %v264
    %v489 = vpack.c.b16 %v474, %v473
    %v490 = vpack.c.b16 %v476, %v475
    %v491 = vpack.c.b16 %v478, %v477
    %v492 = vpack.c.b16 %v480, %v479
    %v493 = vpack.c.b16 %v482, %v481
    %v494 = vpack.c.b16 %v484, %v483
    %v495 = vpack.c.b16 %v486, %v485
    %v496 = vpack.c.b16 %v488, %v487
    %505 = vmatpush.bf16.msra.mxu0 %v496
    %506 = vmatpush.bf16.msra.mxu0 %v495
    %507 = vmatpush.bf16.msra.mxu0 %v494
    %508 = vmatpush.bf16.msra.mxu0 %v493
    %509 = vmatpush.bf16.msra.mxu0 %v492
    %510 = vmatpush.bf16.msra.mxu0 %v491
    %511 = vmatpush.bf16.msra.mxu0 %v490
    %512 = vmatpush.bf16.msra.mxu0 %v489
    %513 = vmatmul.bf16.gmra.mxu0 %v393
    %v514 = vpop.f32.mrf.mxu0
    %v515 = vadd.f32 0.0, %v514
    %v516 = vpop.f32.mrf.mxu0
    %v517 = vadd.f32 0.0, %v516
    %518 = vmatmul.bf16.gmra.mxu0 %v394
    %v519 = vpop.f32.mrf.mxu0
    %v520 = vadd.f32 0.0, %v519
    %v521 = vpop.f32.mrf.mxu0
    %v522 = vadd.f32 0.0, %v521
    %523 = vmatmul.bf16.gmra.mxu0 %v395
    %v524 = vpop.f32.mrf.mxu0
    %v525 = vadd.f32 0.0, %v524
    %v526 = vpop.f32.mrf.mxu0
    %v527 = vadd.f32 0.0, %v526
    %528 = vmatmul.bf16.gmra.mxu0 %v396
    %v529 = vpop.f32.mrf.mxu0
    %v530 = vadd.f32 0.0, %v529
    %v531 = vpop.f32.mrf.mxu0
    %v532 = vadd.f32 0.0, %v531
    %533 = vmatmul.bf16.gmra.mxu0 %v397
    %v534 = vpop.f32.mrf.mxu0
    %v535 = vadd.f32 0.0, %v534
    %v536 = vpop.f32.mrf.mxu0
    %v537 = vadd.f32 0.0, %v536
    %538 = vmatmul.bf16.gmra.mxu0 %v398
    %v539 = vpop.f32.mrf.mxu0
    %v540 = vadd.f32 0.0, %v539
    %v541 = vpop.f32.mrf.mxu0
    %v542 = vadd.f32 0.0, %v541
    %543 = vmatmul.bf16.gmra.mxu0 %v399
    %v544 = vpop.f32.mrf.mxu0
    %v545 = vadd.f32 0.0, %v544
    %v546 = vpop.f32.mrf.mxu0
    %v547 = vadd.f32 0.0, %v546
    %548 = vmatmul.bf16.gmra.mxu0 %v400
    %v549 = vpop.f32.mrf.mxu0
    %v550 = vadd.f32 0.0, %v549
    %v551 = vpop.f32.mrf.mxu0
    %v552 = vadd.f32 0.0, %v551
    %553 = vmatmul.bf16.gmra.mxu0 %v401
    %v554 = vpop.f32.mrf.mxu0
    %v555 = vadd.f32 0.0, %v554
    %v556 = vpop.f32.mrf.mxu0
    %v557 = vadd.f32 0.0, %v556
    %558 = vmatmul.bf16.gmra.mxu0 %v402
    %v559 = vpop.f32.mrf.mxu0
    %v560 = vadd.f32 0.0, %v559
    %v561 = vpop.f32.mrf.mxu0
    %v562 = vadd.f32 0.0, %v561
    %563 = vmatmul.bf16.gmra.mxu0 %v403
    %v564 = vpop.f32.mrf.mxu0
    %v565 = vadd.f32 0.0, %v564
    %v566 = vpop.f32.mrf.mxu0
    %v567 = vadd.f32 0.0, %v566
    %568 = vmatmul.bf16.gmra.mxu0 %v404
    %v569 = vpop.f32.mrf.mxu0
    %v570 = vadd.f32 0.0, %v569
    %v571 = vpop.f32.mrf.mxu0
    %v572 = vadd.f32 0.0, %v571
    %573 = vmatmul.bf16.gmra.mxu0 %v405
    %v574 = vpop.f32.mrf.mxu0
    %v575 = vadd.f32 0.0, %v574
    %v576 = vpop.f32.mrf.mxu0
    %v577 = vadd.f32 0.0, %v576
    %578 = vmatmul.bf16.gmra.mxu0 %v406
    %v579 = vpop.f32.mrf.mxu0
    %v580 = vadd.f32 0.0, %v579
    %v581 = vpop.f32.mrf.mxu0
    %v582 = vadd.f32 0.0, %v581
    %583 = vmatmul.bf16.gmra.mxu0 %v407
    %v584 = vpop.f32.mrf.mxu0
    %v585 = vadd.f32 0.0, %v584
    %v586 = vpop.f32.mrf.mxu0
    %v587 = vadd.f32 0.0, %v586
    %588 = vmatmul.bf16.gmra.mxu0 %v408
    %v589 = vpop.f32.mrf.mxu0
    %v590 = vadd.f32 0.0, %v589
    %v591 = vpop.f32.mrf.mxu0
    %v592 = vadd.f32 0.0, %v591
    %593 = vmatmul.bf16.gmra.mxu0 %v409
    %v594 = vpop.f32.mrf.mxu0
    %v595 = vadd.f32 0.0, %v594
    %v596 = vpop.f32.mrf.mxu0
    %v597 = vadd.f32 0.0, %v596
    %598 = vmatmul.bf16.gmra.mxu0 %v410
    %v599 = vpop.f32.mrf.mxu0
    %v600 = vadd.f32 0.0, %v599
    %v601 = vpop.f32.mrf.mxu0
    %v602 = vadd.f32 0.0, %v601
    %603 = vmatmul.bf16.gmra.mxu0 %v411
    %v604 = vpop.f32.mrf.mxu0
    %v605 = vadd.f32 0.0, %v604
    %v606 = vpop.f32.mrf.mxu0
    %v607 = vadd.f32 0.0, %v606
    %608 = vmatmul.bf16.gmra.mxu0 %v412
    %v609 = vpop.f32.mrf.mxu0
    %v610 = vadd.f32 0.0, %v609
    %v611 = vpop.f32.mrf.mxu0
    %v612 = vadd.f32 0.0, %v611
    %613 = vmatmul.bf16.gmra.mxu0 %v413
    %v614 = vpop.f32.mrf.mxu0
    %v615 = vadd.f32 0.0, %v614
    %v616 = vpop.f32.mrf.mxu0
    %v617 = vadd.f32 0.0, %v616
    %618 = vmatmul.bf16.gmra.mxu0 %v414
    %v619 = vpop.f32.mrf.mxu0
    %v620 = vadd.f32 0.0, %v619
    %v621 = vpop.f32.mrf.mxu0
    %v622 = vadd.f32 0.0, %v621
    %623 = vmatmul.bf16.gmra.mxu0 %v415
    %v624 = vpop.f32.mrf.mxu0
    %v625 = vadd.f32 0.0, %v624
    %v626 = vpop.f32.mrf.mxu0
    %v627 = vadd.f32 0.0, %v626
    %628 = vmatmul.bf16.gmra.mxu0 %v416
    %v629 = vpop.f32.mrf.mxu0
    %v630 = vadd.f32 0.0, %v629
    %v631 = vpop.f32.mrf.mxu0
    %v632 = vadd.f32 0.0, %v631
    %633 = vmatmul.bf16.gmra.mxu0 %v417
    %v634 = vpop.f32.mrf.mxu0
    %v635 = vadd.f32 0.0, %v634
    %v636 = vpop.f32.mrf.mxu0
    %v637 = vadd.f32 0.0, %v636
    %638 = vmatmul.bf16.gmra.mxu0 %v418
    %v639 = vpop.f32.mrf.mxu0
    %v640 = vadd.f32 0.0, %v639
    %v641 = vpop.f32.mrf.mxu0
    %v642 = vadd.f32 0.0, %v641
    %643 = vmatmul.bf16.gmra.mxu0 %v419
    %v644 = vpop.f32.mrf.mxu0
    %v645 = vadd.f32 0.0, %v644
    %v646 = vpop.f32.mrf.mxu0
    %v647 = vadd.f32 0.0, %v646
    %648 = vmatmul.bf16.gmra.mxu0 %v420
    %v649 = vpop.f32.mrf.mxu0
    %v650 = vadd.f32 0.0, %v649
    %v651 = vpop.f32.mrf.mxu0
    %v652 = vadd.f32 0.0, %v651
    %653 = vmatmul.bf16.gmra.mxu0 %v421
    %v654 = vpop.f32.mrf.mxu0
    %v655 = vadd.f32 0.0, %v654
    %v656 = vpop.f32.mrf.mxu0
    %v657 = vadd.f32 0.0, %v656
    %658 = vmatmul.bf16.gmra.mxu0 %v422
    %v659 = vpop.f32.mrf.mxu0
    %v660 = vadd.f32 0.0, %v659
    %v661 = vpop.f32.mrf.mxu0
    %v662 = vadd.f32 0.0, %v661
    %663 = vmatmul.bf16.gmra.mxu0 %v423
    %v664 = vpop.f32.mrf.mxu0
    %v665 = vadd.f32 0.0, %v664
    %v666 = vpop.f32.mrf.mxu0
    %v667 = vadd.f32 0.0, %v666
    %668 = vmatmul.bf16.gmra.mxu0 %v424
    %v669 = vpop.f32.mrf.mxu0
    %v670 = vadd.f32 0.0, %v669
    %v671 = vpop.f32.mrf.mxu0
    %v672 = vadd.f32 0.0, %v671
    %673 = vdwg.mxu0
    %v674 = vadd.f32 %v121, %v515
    %v675 = vadd.f32 %v122, %v517
    %v676 = vadd.f32 %v123, %v520
    %v677 = vadd.f32 %v124, %v522
    %v678 = vadd.f32 %v125, %v525
    %v679 = vadd.f32 %v126, %v527
    %v680 = vadd.f32 %v127, %v530
    %v681 = vadd.f32 %v128, %v532
    %v682 = vadd.f32 %v129, %v535
    %v683 = vadd.f32 %v130, %v537
    %v684 = vadd.f32 %v131, %v540
    %v685 = vadd.f32 %v132, %v542
    %v686 = vadd.f32 %v133, %v545
    %v687 = vadd.f32 %v134, %v547
    %v688 = vadd.f32 %v135, %v550
    %v689 = vadd.f32 %v136, %v552
    %v690 = vadd.f32 %v137, %v555
    %v691 = vadd.f32 %v138, %v557
    %v692 = vadd.f32 %v139, %v560
    %v693 = vadd.f32 %v140, %v562
    %v694 = vadd.f32 %v141, %v565
    %v695 = vadd.f32 %v142, %v567
    %v696 = vadd.f32 %v143, %v570
    %v697 = vadd.f32 %v144, %v572
    %v698 = vadd.f32 %v145, %v575
    %v699 = vadd.f32 %v146, %v577
    %v700 = vadd.f32 %v147, %v580
    %v701 = vadd.f32 %v148, %v582
    %v702 = vadd.f32 %v149, %v585
    %v703 = vadd.f32 %v150, %v587
    %v704 = vadd.f32 %v151, %v590
    %v705 = vadd.f32 %v152, %v592
    %v706 = vadd.f32 %v153, %v595
    %v707 = vadd.f32 %v154, %v597
    %v708 = vadd.f32 %v155, %v600
    %v709 = vadd.f32 %v156, %v602
    %v710 = vadd.f32 %v157, %v605
    %v711 = vadd.f32 %v158, %v607
    %v712 = vadd.f32 %v159, %v610
    %v713 = vadd.f32 %v160, %v612
    %v714 = vadd.f32 %v161, %v615
    %v715 = vadd.f32 %v162, %v617
    %v716 = vadd.f32 %v163, %v620
    %v717 = vadd.f32 %v164, %v622
    %v718 = vadd.f32 %v165, %v625
    %v719 = vadd.f32 %v166, %v627
    %v720 = vadd.f32 %v167, %v630
    %v721 = vadd.f32 %v168, %v632
    %v722 = vadd.f32 %v169, %v635
    %v723 = vadd.f32 %v170, %v637
    %v724 = vadd.f32 %v171, %v640
    %v725 = vadd.f32 %v172, %v642
    %v726 = vadd.f32 %v173, %v645
    %v727 = vadd.f32 %v174, %v647
    %v728 = vadd.f32 %v175, %v650
    %v729 = vadd.f32 %v176, %v652
    %v730 = vadd.f32 %v177, %v655
    %v731 = vadd.f32 %v178, %v657
    %v732 = vadd.f32 %v179, %v660
    %v733 = vadd.f32 %v180, %v662
    %v734 = vadd.f32 %v181, %v665
    %v735 = vadd.f32 %v182, %v667
    %v736 = vadd.f32 %v183, %v670
    %v737 = vadd.f32 %v184, %v672
    %738 = vst [vmem:[#allocation2] sm:$0xff] %v674
    %739 = vst [vmem:[#allocation2 + $0x8] sm:$0xff] %v675
    %740 = vst [vmem:[#allocation2 + $0x10] sm:$0xff] %v676
    %741 = vst [vmem:[#allocation2 + $0x18] sm:$0xff] %v677
    %742 = vst [vmem:[#allocation2 + $0x20] sm:$0xff] %v678
    %743 = vst [vmem:[#allocation2 + $0x28] sm:$0xff] %v679
    %744 = vst [vmem:[#allocation2 + $0x30] sm:$0xff] %v680
    %745 = vst [vmem:[#allocation2 + $0x38] sm:$0xff] %v681
    %746 = vst [vmem:[#allocation2 + $0x40] sm:$0xff] %v682
    %747 = vst [vmem:[#allocation2 + $0x48] sm:$0xff] %v683
    %748 = vst [vmem:[#allocation2 + $0x50] sm:$0xff] %v684
    %749 = vst [vmem:[#allocation2 + $0x58] sm:$0xff] %v685
    %750 = vst [vmem:[#allocation2 + $0x60] sm:$0xff] %v686
    %751 = vst [vmem:[#allocation2 + $0x68] sm:$0xff] %v687
    %752 = vst [vmem:[#allocation2 + $0x70] sm:$0xff] %v688
    %753 = vst [vmem:[#allocation2 + $0x78] sm:$0xff] %v689
    %754 = vst [vmem:[#allocation2 + $0x80] sm:$0xff] %v690
    %755 = vst [vmem:[#allocation2 + $0x88] sm:$0xff] %v691
    %756 = vst [vmem:[#allocation2 + $0x90] sm:$0xff] %v692
    %757 = vst [vmem:[#allocation2 + $0x98] sm:$0xff] %v693
    %758 = vst [vmem:[#allocation2 + $0xa0] sm:$0xff] %v694
    %759 = vst [vmem:[#allocation2 + $0xa8] sm:$0xff] %v695
    %760 = vst [vmem:[#allocation2 + $0xb0] sm:$0xff] %v696
    %761 = vst [vmem:[#allocation2 + $0xb8] sm:$0xff] %v697
    %762 = vst [vmem:[#allocation2 + $0xc0] sm:$0xff] %v698
    %763 = vst [vmem:[#allocation2 + $0xc8] sm:$0xff] %v699
    %764 = vst [vmem:[#allocation2 + $0xd0] sm:$0xff] %v700
    %765 = vst [vmem:[#allocation2 + $0xd8] sm:$0xff] %v701
    %766 = vst [vmem:[#allocation2 + $0xe0] sm:$0xff] %v702
    %767 = vst [vmem:[#allocation2 + $0xe8] sm:$0xff] %v703
    %768 = vst [vmem:[#allocation2 + $0xf0] sm:$0xff] %v704
    %769 = vst [vmem:[#allocation2 + $0xf8] sm:$0xff] %v705
    %770 = vst [vmem:[#allocation2 + $0x100] sm:$0xff] %v706
    %771 = vst [vmem:[#allocation2 + $0x108] sm:$0xff] %v707
    %772 = vst [vmem:[#allocation2 + $0x110] sm:$0xff] %v708
    %773 = vst [vmem:[#allocation2 + $0x118] sm:$0xff] %v709
    %774 = vst [vmem:[#allocation2 + $0x120] sm:$0xff] %v710
    %775 = vst [vmem:[#allocation2 + $0x128] sm:$0xff] %v711
    %776 = vst [vmem:[#allocation2 + $0x130] sm:$0xff] %v712
    %777 = vst [vmem:[#allocation2 + $0x138] sm:$0xff] %v713
    %778 = vst [vmem:[#allocation2 + $0x140] sm:$0xff] %v714
    %779 = vst [vmem:[#allocation2 + $0x148] sm:$0xff] %v715
    %780 = vst [vmem:[#allocation2 + $0x150] sm:$0xff] %v716
    %781 = vst [vmem:[#allocation2 + $0x158] sm:$0xff] %v717
    %782 = vst [vmem:[#allocation2 + $0x160] sm:$0xff] %v718
    %783 = vst [vmem:[#allocation2 + $0x168] sm:$0xff] %v719
    %784 = vst [vmem:[#allocation2 + $0x170] sm:$0xff] %v720
    %785 = vst [vmem:[#allocation2 + $0x178] sm:$0xff] %v721
    %786 = vst [vmem:[#allocation2 + $0x180] sm:$0xff] %v722
    %787 = vst [vmem:[#allocation2 + $0x188] sm:$0xff] %v723
    %788 = vst [vmem:[#allocation2 + $0x190] sm:$0xff] %v724
    %789 = vst [vmem:[#allocation2 + $0x198] sm:$0xff] %v725
    %790 = vst [vmem:[#allocation2 + $0x1a0] sm:$0xff] %v726
    %791 = vst [vmem:[#allocation2 + $0x1a8] sm:$0xff] %v727
    %792 = vst [vmem:[#allocation2 + $0x1b0] sm:$0xff] %v728
    %793 = vst [vmem:[#allocation2 + $0x1b8] sm:$0xff] %v729
    %794 = vst [vmem:[#allocation2 + $0x1c0] sm:$0xff] %v730
    %795 = vst [vmem:[#allocation2 + $0x1c8] sm:$0xff] %v731
    %796 = vst [vmem:[#allocation2 + $0x1d0] sm:$0xff] %v732
    %797 = vst [vmem:[#allocation2 + $0x1d8] sm:$0xff] %v733
    %798 = vst [vmem:[#allocation2 + $0x1e0] sm:$0xff] %v734
    %799 = vst [vmem:[#allocation2 + $0x1e8] sm:$0xff] %v735
    %800 = vst [vmem:[#allocation2 + $0x1f0] sm:$0xff] %v736
    %801 = vst [vmem:[#allocation2 + $0x1f8] sm:$0xff] %v737
    // Predicated region
    $region34: #{tpu_custom_call.1} parent=1 // pred_check
      %p802 = pneg %p53
    $region35: #{tpu_custom_call.1} parent=1 // pred_check_branch
      %804 = sbr.rel (%p802) target = $region37
    $region36: #{tpu_custom_call.1} parent=1 // pred_region
      %v805 = vld [vmem:[#allocation2] sm:$0xff]
      %v806 = vld [vmem:[#allocation2 + $0x8] sm:$0xff]
      %v807 = vld [vmem:[#allocation2 + $0x10] sm:$0xff]
      %v808 = vld [vmem:[#allocation2 + $0x18] sm:$0xff]
      %v809 = vld [vmem:[#allocation2 + $0x20] sm:$0xff]
      %v810 = vld [vmem:[#allocation2 + $0x28] sm:$0xff]
      %v811 = vld [vmem:[#allocation2 + $0x30] sm:$0xff]
      %v812 = vld [vmem:[#allocation2 + $0x38] sm:$0xff]
      %v813 = vld [vmem:[#allocation2 + $0x40] sm:$0xff]
      %v814 = vld [vmem:[#allocation2 + $0x48] sm:$0xff]
      %v815 = vld [vmem:[#allocation2 + $0x50] sm:$0xff]
      %v816 = vld [vmem:[#allocation2 + $0x58] sm:$0xff]
      %v817 = vld [vmem:[#allocation2 + $0x60] sm:$0xff]
      %v818 = vld [vmem:[#allocation2 + $0x68] sm:$0xff]
      %v819 = vld [vmem:[#allocation2 + $0x70] sm:$0xff]
      %v820 = vld [vmem:[#allocation2 + $0x78] sm:$0xff]
      %v821 = vld [vmem:[#allocation2 + $0x80] sm:$0xff]
      %v822 = vld [vmem:[#allocation2 + $0x88] sm:$0xff]
      %v823 = vld [vmem:[#allocation2 + $0x90] sm:$0xff]
      %v824 = vld [vmem:[#allocation2 + $0x98] sm:$0xff]
      %v825 = vld [vmem:[#allocation2 + $0xa0] sm:$0xff]
      %v826 = vld [vmem:[#allocation2 + $0xa8] sm:$0xff]
      %v827 = vld [vmem:[#allocation2 + $0xb0] sm:$0xff]
      %v828 = vld [vmem:[#allocation2 + $0xb8] sm:$0xff]
      %v829 = vld [vmem:[#allocation2 + $0xc0] sm:$0xff]
      %v830 = vld [vmem:[#allocation2 + $0xc8] sm:$0xff]
      %v831 = vld [vmem:[#allocation2 + $0xd0] sm:$0xff]
      %v832 = vld [vmem:[#allocation2 + $0xd8] sm:$0xff]
      %v833 = vld [vmem:[#allocation2 + $0xe0] sm:$0xff]
      %v834 = vld [vmem:[#allocation2 + $0xe8] sm:$0xff]
      %v835 = vld [vmem:[#allocation2 + $0xf0] sm:$0xff]
      %v836 = vld [vmem:[#allocation2 + $0xf8] sm:$0xff]
      %v837 = vld [vmem:[#allocation2 + $0x100] sm:$0xff]
      %v838 = vld [vmem:[#allocation2 + $0x108] sm:$0xff]
      %v839 = vld [vmem:[#allocation2 + $0x110] sm:$0xff]
      %v840 = vld [vmem:[#allocation2 + $0x118] sm:$0xff]
      %v841 = vld [vmem:[#allocation2 + $0x120] sm:$0xff]
      %v842 = vld [vmem:[#allocation2 + $0x128] sm:$0xff]
      %v843 = vld [vmem:[#allocation2 + $0x130] sm:$0xff]
      %v844 = vld [vmem:[#allocation2 + $0x138] sm:$0xff]
      %v845 = vld [vmem:[#allocation2 + $0x140] sm:$0xff]
      %v846 = vld [vmem:[#allocation2 + $0x148] sm:$0xff]
      %v847 = vld [vmem:[#allocation2 + $0x150] sm:$0xff]
      %v848 = vld [vmem:[#allocation2 + $0x158] sm:$0xff]
      %v849 = vld [vmem:[#allocation2 + $0x160] sm:$0xff]
      %v850 = vld [vmem:[#allocation2 + $0x168] sm:$0xff]
      %v851 = vld [vmem:[#allocation2 + $0x170] sm:$0xff]
      %v852 = vld [vmem:[#allocation2 + $0x178] sm:$0xff]
      %v853 = vld [vmem:[#allocation2 + $0x180] sm:$0xff]
      %v854 = vld [vmem:[#allocation2 + $0x188] sm:$0xff]
      %v855 = vld [vmem:[#allocation2 + $0x190] sm:$0xff]
      %v856 = vld [vmem:[#allocation2 + $0x198] sm:$0xff]
      %v857 = vld [vmem:[#allocation2 + $0x1a0] sm:$0xff]
      %v858 = vld [vmem:[#allocation2 + $0x1a8] sm:$0xff]
      %v859 = vld [vmem:[#allocation2 + $0x1b0] sm:$0xff]
      %v860 = vld [vmem:[#allocation2 + $0x1b8] sm:$0xff]
      %v861 = vld [vmem:[#allocation2 + $0x1c0] sm:$0xff]
      %v862 = vld [vmem:[#allocation2 + $0x1c8] sm:$0xff]
      %v863 = vld [vmem:[#allocation2 + $0x1d0] sm:$0xff]
      %v864 = vld [vmem:[#allocation2 + $0x1d8] sm:$0xff]
      %v865 = vld [vmem:[#allocation2 + $0x1e0] sm:$0xff]
      %v866 = vld [vmem:[#allocation2 + $0x1e8] sm:$0xff]
      %v867 = vld [vmem:[#allocation2 + $0x1f0] sm:$0xff]
      %v868 = vld [vmem:[#allocation2 + $0x1f8] sm:$0xff]
      %v869 = vld [vmem:[%s2] sm:$0x1]
      %v871 = vperm.slane %v869, 0
      %v873 = vmul.f32 %v805, %v871
      %v874 = vmul.f32 %v806, %v871
      %v875 = vmul.f32 %v807, %v871
      %v876 = vmul.f32 %v808, %v871
      %v877 = vmul.f32 %v809, %v871
      %v878 = vmul.f32 %v810, %v871
      %v879 = vmul.f32 %v811, %v871
      %v880 = vmul.f32 %v812, %v871
      %v881 = vmul.f32 %v813, %v871
      %v882 = vmul.f32 %v814, %v871
      %v883 = vmul.f32 %v815, %v871
      %v884 = vmul.f32 %v816, %v871
      %v885 = vmul.f32 %v817, %v871
      %v886 = vmul.f32 %v818, %v871
      %v887 = vmul.f32 %v819, %v871
      %v888 = vmul.f32 %v820, %v871
      %v889 = vmul.f32 %v821, %v871
      %v890 = vmul.f32 %v822, %v871
      %v891 = vmul.f32 %v823, %v871
      %v892 = vmul.f32 %v824, %v871
      %v893 = vmul.f32 %v825, %v871
      %v894 = vmul.f32 %v826, %v871
      %v895 = vmul.f32 %v827, %v871
      %v896 = vmul.f32 %v828, %v871
      %v897 = vmul.f32 %v829, %v871
      %v898 = vmul.f32 %v830, %v871
      %v899 = vmul.f32 %v831, %v871
      %v900 = vmul.f32 %v832, %v871
      %v901 = vmul.f32 %v833, %v871
      %v902 = vmul.f32 %v834, %v871
      %v903 = vmul.f32 %v835, %v871
      %v904 = vmul.f32 %v836, %v871
      %v905 = vmul.f32 %v837, %v871
      %v906 = vmul.f32 %v838, %v871
      %v907 = vmul.f32 %v839, %v871
      %v908 = vmul.f32 %v840, %v871
      %v909 = vmul.f32 %v841, %v871
      %v910 = vmul.f32 %v842, %v871
      %v911 = vmul.f32 %v843, %v871
      %v912 = vmul.f32 %v844, %v871
      %v913 = vmul.f32 %v845, %v871
      %v914 = vmul.f32 %v846, %v871
      %v915 = vmul.f32 %v847, %v871
      %v916 = vmul.f32 %v848, %v871
      %v917 = vmul.f32 %v849, %v871
      %v918 = vmul.f32 %v850, %v871
      %v919 = vmul.f32 %v851, %v871
      %v920 = vmul.f32 %v852, %v871
      %v921 = vmul.f32 %v853, %v871
      %v922 = vmul.f32 %v854, %v871
      %v923 = vmul.f32 %v855, %v871
      %v924 = vmul.f32 %v856, %v871
      %v925 = vmul.f32 %v857, %v871
      %v926 = vmul.f32 %v858, %v871
      %v927 = vmul.f32 %v859, %v871
      %v928 = vmul.f32 %v860, %v871
      %v929 = vmul.f32 %v861, %v871
      %v930 = vmul.f32 %v862, %v871
      %v931 = vmul.f32 %v863, %v871
      %v932 = vmul.f32 %v864, %v871
      %v933 = vmul.f32 %v865, %v871
      %v934 = vmul.f32 %v866, %v871
      %v935 = vmul.f32 %v867, %v871
      %v936 = vmul.f32 %v868, %v871
      %v937 = vadd.f32 %v873, %v874
      %v938 = vadd.f32 %v937, %v875
      %v939 = vadd.f32 %v938, %v876
      %v940 = vadd.f32 %v939, %v877
      %v941 = vadd.f32 %v940, %v878
      %v942 = vadd.f32 %v941, %v879
      %v943 = vadd.f32 %v942, %v880
      %v944 = vadd.f32 %v943, %v881
      %v945 = vadd.f32 %v944, %v882
      %v946 = vadd.f32 %v945, %v883
      %v947 = vadd.f32 %v946, %v884
      %v948 = vadd.f32 %v947, %v885
      %v949 = vadd.f32 %v948, %v886
      %v950 = vadd.f32 %v949, %v887
      %v951 = vadd.f32 %v950, %v888
      %v952 = vadd.f32 %v951, %v889
      %v953 = vadd.f32 %v952, %v890
      %v954 = vadd.f32 %v953, %v891
      %v955 = vadd.f32 %v954, %v892
      %v956 = vadd.f32 %v955, %v893
      %v957 = vadd.f32 %v956, %v894
      %v958 = vadd.f32 %v957, %v895
      %v959 = vadd.f32 %v958, %v896
      %v960 = vadd.f32 %v959, %v897
      %v961 = vadd.f32 %v960, %v898
      %v962 = vadd.f32 %v961, %v899
      %v963 = vadd.f32 %v962, %v900
      %v964 = vadd.f32 %v963, %v901
      %v965 = vadd.f32 %v964, %v902
      %v966 = vadd.f32 %v965, %v903
      %v967 = vadd.f32 %v966, %v904
      %v968 = vadd.f32 %v967, %v905
      %v969 = vadd.f32 %v968, %v906
      %v970 = vadd.f32 %v969, %v907
      %v971 = vadd.f32 %v970, %v908
      %v972 = vadd.f32 %v971, %v909
      %v973 = vadd.f32 %v972, %v910
      %v974 = vadd.f32 %v973, %v911
      %v975 = vadd.f32 %v974, %v912
      %v976 = vadd.f32 %v975, %v913
      %v977 = vadd.f32 %v976, %v914
      %v978 = vadd.f32 %v977, %v915
      %v979 = vadd.f32 %v978, %v916
      %v980 = vadd.f32 %v979, %v917
      %v981 = vadd.f32 %v980, %v918
      %v982 = vadd.f32 %v981, %v919
      %v983 = vadd.f32 %v982, %v920
      %v984 = vadd.f32 %v983, %v921
      %v985 = vadd.f32 %v984, %v922
      %v986 = vadd.f32 %v985, %v923
      %v987 = vadd.f32 %v986, %v924
      %v988 = vadd.f32 %v987, %v925
      %v989 = vadd.f32 %v988, %v926
      %v990 = vadd.f32 %v989, %v927
      %v991 = vadd.f32 %v990, %v928
      %v992 = vadd.f32 %v991, %v929
      %v993 = vadd.f32 %v992, %v930
      %v994 = vadd.f32 %v993, %v931
      %v995 = vadd.f32 %v994, %v932
      %v996 = vadd.f32 %v995, %v933
      %v997 = vadd.f32 %v996, %v934
      %v998 = vadd.f32 %v997, %v935
      %v999 = vadd.f32 %v998, %v936
      %v1000 = vrot.slane %v999, 4
      %v1001 = vadd.f32 %v999, %v1000
      %v1002 = vrot.slane %v1001, 2
      %v1003 = vadd.f32 %v1001, %v1002
      %v1004 = vrot.slane %v1003, 1
      %v1005 = vadd.f32 %v1003, %v1004
      %v1006 = vmul.f32 %v1005, 0.001953125
      %v1007 = vmul.f32 %v873, %v873
      %v1008 = vmul.f32 %v874, %v874
      %v1009 = vmul.f32 %v875, %v875
      %v1010 = vmul.f32 %v876, %v876
      %v1011 = vmul.f32 %v877, %v877
      %v1012 = vmul.f32 %v878, %v878
      %v1013 = vmul.f32 %v879, %v879
      %v1014 = vmul.f32 %v880, %v880
      %v1015 = vmul.f32 %v881, %v881
      %v1016 = vmul.f32 %v882, %v882
      %v1017 = vmul.f32 %v883, %v883
      %v1018 = vmul.f32 %v884, %v884
      %v1019 = vmul.f32 %v885, %v885
      %v1020 = vmul.f32 %v886, %v886
      %v1021 = vmul.f32 %v887, %v887
      %v1022 = vmul.f32 %v888, %v888
      %v1023 = vmul.f32 %v889, %v889
      %v1024 = vmul.f32 %v890, %v890
      %v1025 = vmul.f32 %v891, %v891
      %v1026 = vmul.f32 %v892, %v892
      %v1027 = vmul.f32 %v893, %v893
      %v1028 = vmul.f32 %v894, %v894
      %v1029 = vmul.f32 %v895, %v895
      %v1030 = vmul.f32 %v896, %v896
      %v1031 = vmul.f32 %v897, %v897
      %v1032 = vmul.f32 %v898, %v898
      %v1033 = vmul.f32 %v899, %v899
      %v1034 = vmul.f32 %v900, %v900
      %v1035 = vmul.f32 %v901, %v901
      %v1036 = vmul.f32 %v902, %v902
      %v1037 = vmul.f32 %v903, %v903
      %v1038 = vmul.f32 %v904, %v904
      %v1039 = vmul.f32 %v905, %v905
      %v1040 = vmul.f32 %v906, %v906
      %v1041 = vmul.f32 %v907, %v907
      %v1042 = vmul.f32 %v908, %v908
      %v1043 = vmul.f32 %v909, %v909
      %v1044 = vmul.f32 %v910, %v910
      %v1045 = vmul.f32 %v911, %v911
      %v1046 = vmul.f32 %v912, %v912
      %v1047 = vmul.f32 %v913, %v913
      %v1048 = vmul.f32 %v914, %v914
      %v1049 = vmul.f32 %v915, %v915
      %v1050 = vmul.f32 %v916, %v916
      %v1051 = vmul.f32 %v917, %v917
      %v1052 = vmul.f32 %v918, %v918
      %v1053 = vmul.f32 %v919, %v919
      %v1054 = vmul.f32 %v920, %v920
      %v1055 = vmul.f32 %v921, %v921
      %v1056 = vmul.f32 %v922, %v922
      %v1057 = vmul.f32 %v923, %v923
      %v1058 = vmul.f32 %v924, %v924
      %v1059 = vmul.f32 %v925, %v925
      %v1060 = vmul.f32 %v926, %v926
      %v1061 = vmul.f32 %v927, %v927
      %v1062 = vmul.f32 %v928, %v928
      %v1063 = vmul.f32 %v929, %v929
      %v1064 = vmul.f32 %v930, %v930
      %v1065 = vmul.f32 %v931, %v931
      %v1066 = vmul.f32 %v932, %v932
      %v1067 = vmul.f32 %v933, %v933
      %v1068 = vmul.f32 %v934, %v934
      %v1069 = vmul.f32 %v935, %v935
      %v1070 = vmul.f32 %v936, %v936
      %v1071 = vadd.f32 %v1007, %v1008
      %v1072 = vadd.f32 %v1071, %v1009
      %v1073 = vadd.f32 %v1072, %v1010
      %v1074 = vadd.f32 %v1073, %v1011
      %v1075 = vadd.f32 %v1074, %v1012
      %v1076 = vadd.f32 %v1075, %v1013
      %v1077 = vadd.f32 %v1076, %v1014
      %v1078 = vadd.f32 %v1077, %v1015
      %v1079 = vadd.f32 %v1078, %v1016
      %v1080 = vadd.f32 %v1079, %v1017
      %v1081 = vadd.f32 %v1080, %v1018
      %v1082 = vadd.f32 %v1081, %v1019
      %v1083 = vadd.f32 %v1082, %v1020
      %v1084 = vadd.f32 %v1083, %v1021
      %v1085 = vadd.f32 %v1084, %v1022
      %v1086 = vadd.f32 %v1085, %v1023
      %v1087 = vadd.f32 %v1086, %v1024
      %v1088 = vadd.f32 %v1087, %v1025
      %v1089 = vadd.f32 %v1088, %v1026
      %v1090 = vadd.f32 %v1089, %v1027
      %v1091 = vadd.f32 %v1090, %v1028
      %v1092 = vadd.f32 %v1091, %v1029
      %v1093 = vadd.f32 %v1092, %v1030
      %v1094 = vadd.f32 %v1093, %v1031
      %v1095 = vadd.f32 %v1094, %v1032
      %v1096 = vadd.f32 %v1095, %v1033
      %v1097 = vadd.f32 %v1096, %v1034
      %v1098 = vadd.f32 %v1097, %v1035
      %v1099 = vadd.f32 %v1098, %v1036
      %v1100 = vadd.f32 %v1099, %v1037
      %v1101 = vadd.f32 %v1100, %v1038
      %v1102 = vadd.f32 %v1101, %v1039
      %v1103 = vadd.f32 %v1102, %v1040
      %v1104 = vadd.f32 %v1103, %v1041
      %v1105 = vadd.f32 %v1104, %v1042
      %v1106 = vadd.f32 %v1105, %v1043
      %v1107 = vadd.f32 %v1106, %v1044
      %v1108 = vadd.f32 %v1107, %v1045
      %v1109 = vadd.f32 %v1108, %v1046
      %v1110 = vadd.f32 %v1109, %v1047
      %v1111 = vadd.f32 %v1110, %v1048
      %v1112 = vadd.f32 %v1111, %v1049
      %v1113 = vadd.f32 %v1112, %v1050
      %v1114 = vadd.f32 %v1113, %v1051
      %v1115 = vadd.f32 %v1114, %v1052
      %v1116 = vadd.f32 %v1115, %v1053
      %v1117 = vadd.f32 %v1116, %v1054
      %v1118 = vadd.f32 %v1117, %v1055
      %v1119 = vadd.f32 %v1118, %v1056
      %v1120 = vadd.f32 %v1119, %v1057
      %v1121 = vadd.f32 %v1120, %v1058
      %v1122 = vadd.f32 %v1121, %v1059
      %v1123 = vadd.f32 %v1122, %v1060
      %v1124 = vadd.f32 %v1123, %v1061
      %v1125 = vadd.f32 %v1124, %v1062
      %v1126 = vadd.f32 %v1125, %v1063
      %v1127 = vadd.f32 %v1126, %v1064
      %v1128 = vadd.f32 %v1127, %v1065
      %v1129 = vadd.f32 %v1128, %v1066
      %v1130 = vadd.f32 %v1129, %v1067
      %v1131 = vadd.f32 %v1130, %v1068
      %v1132 = vadd.f32 %v1131, %v1069
      %v1133 = vadd.f32 %v1132, %v1070
      %v1134 = vrot.slane %v1133, 4
      %v1135 = vadd.f32 %v1133, %v1134
      %v1136 = vrot.slane %v1135, 2
      %v1137 = vadd.f32 %v1135, %v1136
      %v1138 = vrot.slane %v1137, 1
      %v1139 = vadd.f32 %v1137, %v1138
      %v1140 = vmul.f32 %v1139, 0.001953125
      %v1141 = vmul.f32 %v1006, %v1006
      %v1142 = vsub.f32 %v1140, %v1141
      %v1143 = vadd.f32 %v1142, 1e-05
      %v1144 = vrsqrt.pop %v1143
      %v1145 = vmul.f32 %v1144, %v1143
      %v1146 = vmul.f32 %v1145, %v1144
      %v1147 = vmul.f32 0.5, %v1146
      %v1148 = vsub.f32 1.5, %v1147
      %v1149 = vmul.f32 %v1144, %v1148
      %vm1150 = vweird.f32 %v1143
      %vm1151 = vweird.f32 %v1144
      %vm1152 = vmor %vm1150, %vm1151
      %v1153 = vsel %vm1152, %v1144, %v1149
      %v1154 = vld [vmem:[%s3] sm:$0x1]
      %v1155 = vmul.f32 %v1153, %v1154
      %v1156 = vsub.f32 %v873, %v1006
      %v1157 = vsub.f32 %v874, %v1006
      %v1158 = vsub.f32 %v875, %v1006
      %v1159 = vsub.f32 %v876, %v1006
      %v1160 = vsub.f32 %v877, %v1006
      %v1161 = vsub.f32 %v878, %v1006
      %v1162 = vsub.f32 %v879, %v1006
      %v1163 = vsub.f32 %v880, %v1006
      %v1164 = vsub.f32 %v881, %v1006
      %v1165 = vsub.f32 %v882, %v1006
      %v1166 = vsub.f32 %v883, %v1006
      %v1167 = vsub.f32 %v884, %v1006
      %v1168 = vsub.f32 %v885, %v1006
      %v1169 = vsub.f32 %v886, %v1006
      %v1170 = vsub.f32 %v887, %v1006
      %v1171 = vsub.f32 %v888, %v1006
      %v1172 = vsub.f32 %v889, %v1006
      %v1173 = vsub.f32 %v890, %v1006
      %v1174 = vsub.f32 %v891, %v1006
      %v1175 = vsub.f32 %v892, %v1006
      %v1176 = vsub.f32 %v893, %v1006
      %v1177 = vsub.f32 %v894, %v1006
      %v1178 = vsub.f32 %v895, %v1006
      %v1179 = vsub.f32 %v896, %v1006
      %v1180 = vsub.f32 %v897, %v1006
      %v1181 = vsub.f32 %v898, %v1006
      %v1182 = vsub.f32 %v899, %v1006
      %v1183 = vsub.f32 %v900, %v1006
      %v1184 = vsub.f32 %v901, %v1006
      %v1185 = vsub.f32 %v902, %v1006
      %v1186 = vsub.f32 %v903, %v1006
      %v1187 = vsub.f32 %v904, %v1006
      %v1188 = vsub.f32 %v905, %v1006
      %v1189 = vsub.f32 %v906, %v1006
      %v1190 = vsub.f32 %v907, %v1006
      %v1191 = vsub.f32 %v908, %v1006
      %v1192 = vsub.f32 %v909, %v1006
      %v1193 = vsub.f32 %v910, %v1006
      %v1194 = vsub.f32 %v911, %v1006
      %v1195 = vsub.f32 %v912, %v1006
      %v1196 = vsub.f32 %v913, %v1006
      %v1197 = vsub.f32 %v914, %v1006
      %v1198 = vsub.f32 %v915, %v1006
      %v1199 = vsub.f32 %v916, %v1006
      %v1200 = vsub.f32 %v917, %v1006
      %v1201 = vsub.f32 %v918, %v1006
      %v1202 = vsub.f32 %v919, %v1006
      %v1203 = vsub.f32 %v920, %v1006
      %v1204 = vsub.f32 %v921, %v1006
      %v1205 = vsub.f32 %v922, %v1006
      %v1206 = vsub.f32 %v923, %v1006
      %v1207 = vsub.f32 %v924, %v1006
      %v1208 = vsub.f32 %v925, %v1006
      %v1209 = vsub.f32 %v926, %v1006
      %v1210 = vsub.f32 %v927, %v1006
      %v1211 = vsub.f32 %v928, %v1006
      %v1212 = vsub.f32 %v929, %v1006
      %v1213 = vsub.f32 %v930, %v1006
      %v1214 = vsub.f32 %v931, %v1006
      %v1215 = vsub.f32 %v932, %v1006
      %v1216 = vsub.f32 %v933, %v1006
      %v1217 = vsub.f32 %v934, %v1006
      %v1218 = vsub.f32 %v935, %v1006
      %v1219 = vsub.f32 %v936, %v1006
      %v1220 = vperm.slane %v1155, 0
      %v1221 = vmul.f32 %v1156, %v1220
      %v1222 = vmul.f32 %v1157, %v1220
      %v1223 = vmul.f32 %v1158, %v1220
      %v1224 = vmul.f32 %v1159, %v1220
      %v1225 = vmul.f32 %v1160, %v1220
      %v1226 = vmul.f32 %v1161, %v1220
      %v1227 = vmul.f32 %v1162, %v1220
      %v1228 = vmul.f32 %v1163, %v1220
      %v1229 = vmul.f32 %v1164, %v1220
      %v1230 = vmul.f32 %v1165, %v1220
      %v1231 = vmul.f32 %v1166, %v1220
      %v1232 = vmul.f32 %v1167, %v1220
      %v1233 = vmul.f32 %v1168, %v1220
      %v1234 = vmul.f32 %v1169, %v1220
      %v1235 = vmul.f32 %v1170, %v1220
      %v1236 = vmul.f32 %v1171, %v1220
      %v1237 = vmul.f32 %v1172, %v1220
      %v1238 = vmul.f32 %v1173, %v1220
      %v1239 = vmul.f32 %v1174, %v1220
      %v1240 = vmul.f32 %v1175, %v1220
      %v1241 = vmul.f32 %v1176, %v1220
      %v1242 = vmul.f32 %v1177, %v1220
      %v1243 = vmul.f32 %v1178, %v1220
      %v1244 = vmul.f32 %v1179, %v1220
      %v1245 = vmul.f32 %v1180, %v1220
      %v1246 = vmul.f32 %v1181, %v1220
      %v1247 = vmul.f32 %v1182, %v1220
      %v1248 = vmul.f32 %v1183, %v1220
      %v1249 = vmul.f32 %v1184, %v1220
      %v1250 = vmul.f32 %v1185, %v1220
      %v1251 = vmul.f32 %v1186, %v1220
      %v1252 = vmul.f32 %v1187, %v1220
      %v1253 = vmul.f32 %v1188, %v1220
      %v1254 = vmul.f32 %v1189, %v1220
      %v1255 = vmul.f32 %v1190, %v1220
      %v1256 = vmul.f32 %v1191, %v1220
      %v1257 = vmul.f32 %v1192, %v1220
      %v1258 = vmul.f32 %v1193, %v1220
      %v1259 = vmul.f32 %v1194, %v1220
      %v1260 = vmul.f32 %v1195, %v1220
      %v1261 = vmul.f32 %v1196, %v1220
      %v1262 = vmul.f32 %v1197, %v1220
      %v1263 = vmul.f32 %v1198, %v1220
      %v1264 = vmul.f32 %v1199, %v1220
      %v1265 = vmul.f32 %v1200, %v1220
      %v1266 = vmul.f32 %v1201, %v1220
      %v1267 = vmul.f32 %v1202, %v1220
      %v1268 = vmul.f32 %v1203, %v1220
      %v1269 = vmul.f32 %v1204, %v1220
      %v1270 = vmul.f32 %v1205, %v1220
      %v1271 = vmul.f32 %v1206, %v1220
      %v1272 = vmul.f32 %v1207, %v1220
      %v1273 = vmul.f32 %v1208, %v1220
      %v1274 = vmul.f32 %v1209, %v1220
      %v1275 = vmul.f32 %v1210, %v1220
      %v1276 = vmul.f32 %v1211, %v1220
      %v1277 = vmul.f32 %v1212, %v1220
      %v1278 = vmul.f32 %v1213, %v1220
      %v1279 = vmul.f32 %v1214, %v1220
      %v1280 = vmul.f32 %v1215, %v1220
      %v1281 = vmul.f32 %v1216, %v1220
      %v1282 = vmul.f32 %v1217, %v1220
      %v1283 = vmul.f32 %v1218, %v1220
      %v1284 = vmul.f32 %v1219, %v1220
      %v1285 = vld [vmem:[%s4] sm:$0x1]
      %v1287 = vperm.slane %v1285, 0
      %v1289 = vadd.f32 %v1221, %v1287
      %v1290 = vadd.f32 %v1222, %v1287
      %v1291 = vadd.f32 %v1223, %v1287
      %v1292 = vadd.f32 %v1224, %v1287
      %v1293 = vadd.f32 %v1225, %v1287
      %v1294 = vadd.f32 %v1226, %v1287
      %v1295 = vadd.f32 %v1227, %v1287
      %v1296 = vadd.f32 %v1228, %v1287
      %v1297 = vadd.f32 %v1229, %v1287
      %v1298 = vadd.f32 %v1230, %v1287
      %v1299 = vadd.f32 %v1231, %v1287
      %v1300 = vadd.f32 %v1232, %v1287
      %v1301 = vadd.f32 %v1233, %v1287
      %v1302 = vadd.f32 %v1234, %v1287
      %v1303 = vadd.f32 %v1235, %v1287
      %v1304 = vadd.f32 %v1236, %v1287
      %v1305 = vadd.f32 %v1237, %v1287
      %v1306 = vadd.f32 %v1238, %v1287
      %v1307 = vadd.f32 %v1239, %v1287
      %v1308 = vadd.f32 %v1240, %v1287
      %v1309 = vadd.f32 %v1241, %v1287
      %v1310 = vadd.f32 %v1242, %v1287
      %v1311 = vadd.f32 %v1243, %v1287
      %v1312 = vadd.f32 %v1244, %v1287
      %v1313 = vadd.f32 %v1245, %v1287
      %v1314 = vadd.f32 %v1246, %v1287
      %v1315 = vadd.f32 %v1247, %v1287
      %v1316 = vadd.f32 %v1248, %v1287
      %v1317 = vadd.f32 %v1249, %v1287
      %v1318 = vadd.f32 %v1250, %v1287
      %v1319 = vadd.f32 %v1251, %v1287
      %v1320 = vadd.f32 %v1252, %v1287
      %v1321 = vadd.f32 %v1253, %v1287
      %v1322 = vadd.f32 %v1254, %v1287
      %v1323 = vadd.f32 %v1255, %v1287
      %v1324 = vadd.f32 %v1256, %v1287
      %v1325 = vadd.f32 %v1257, %v1287
      %v1326 = vadd.f32 %v1258, %v1287
      %v1327 = vadd.f32 %v1259, %v1287
      %v1328 = vadd.f32 %v1260, %v1287
      %v1329 = vadd.f32 %v1261, %v1287
      %v1330 = vadd.f32 %v1262, %v1287
      %v1331 = vadd.f32 %v1263, %v1287
      %v1332 = vadd.f32 %v1264, %v1287
      %v1333 = vadd.f32 %v1265, %v1287
      %v1334 = vadd.f32 %v1266, %v1287
      %v1335 = vadd.f32 %v1267, %v1287
      %v1336 = vadd.f32 %v1268, %v1287
      %v1337 = vadd.f32 %v1269, %v1287
      %v1338 = vadd.f32 %v1270, %v1287
      %v1339 = vadd.f32 %v1271, %v1287
      %v1340 = vadd.f32 %v1272, %v1287
      %v1341 = vadd.f32 %v1273, %v1287
      %v1342 = vadd.f32 %v1274, %v1287
      %v1343 = vadd.f32 %v1275, %v1287
      %v1344 = vadd.f32 %v1276, %v1287
      %v1345 = vadd.f32 %v1277, %v1287
      %v1346 = vadd.f32 %v1278, %v1287
      %v1347 = vadd.f32 %v1279, %v1287
      %v1348 = vadd.f32 %v1280, %v1287
      %v1349 = vadd.f32 %v1281, %v1287
      %v1350 = vadd.f32 %v1282, %v1287
      %v1351 = vadd.f32 %v1283, %v1287
      %v1352 = vadd.f32 %v1284, %v1287
      %v1353 = vmax.f32 %v1289, 0.0
      %v1354 = vmax.f32 %v1290, 0.0
      %v1355 = vmax.f32 %v1291, 0.0
      %v1356 = vmax.f32 %v1292, 0.0
      %v1357 = vmax.f32 %v1293, 0.0
      %v1358 = vmax.f32 %v1294, 0.0
      %v1359 = vmax.f32 %v1295, 0.0
      %v1360 = vmax.f32 %v1296, 0.0
      %v1361 = vmax.f32 %v1297, 0.0
      %v1362 = vmax.f32 %v1298, 0.0
      %v1363 = vmax.f32 %v1299, 0.0
      %v1364 = vmax.f32 %v1300, 0.0
      %v1365 = vmax.f32 %v1301, 0.0
      %v1366 = vmax.f32 %v1302, 0.0
      %v1367 = vmax.f32 %v1303, 0.0
      %v1368 = vmax.f32 %v1304, 0.0
      %v1369 = vmax.f32 %v1305, 0.0
      %v1370 = vmax.f32 %v1306, 0.0
      %v1371 = vmax.f32 %v1307, 0.0
      %v1372 = vmax.f32 %v1308, 0.0
      %v1373 = vmax.f32 %v1309, 0.0
      %v1374 = vmax.f32 %v1310, 0.0
      %v1375 = vmax.f32 %v1311, 0.0
      %v1376 = vmax.f32 %v1312, 0.0
      %v1377 = vmax.f32 %v1313, 0.0
      %v1378 = vmax.f32 %v1314, 0.0
      %v1379 = vmax.f32 %v1315, 0.0
      %v1380 = vmax.f32 %v1316, 0.0
      %v1381 = vmax.f32 %v1317, 0.0
      %v1382 = vmax.f32 %v1318, 0.0
      %v1383 = vmax.f32 %v1319, 0.0
      %v1384 = vmax.f32 %v1320, 0.0
      %v1385 = vmax.f32 %v1321, 0.0
      %v1386 = vmax.f32 %v1322, 0.0
      %v1387 = vmax.f32 %v1323, 0.0
      %v1388 = vmax.f32 %v1324, 0.0
      %v1389 = vmax.f32 %v1325, 0.0
      %v1390 = vmax.f32 %v1326, 0.0
      %v1391 = vmax.f32 %v1327, 0.0
      %v1392 = vmax.f32 %v1328, 0.0
      %v1393 = vmax.f32 %v1329, 0.0
      %v1394 = vmax.f32 %v1330, 0.0
      %v1395 = vmax.f32 %v1331, 0.0
      %v1396 = vmax.f32 %v1332, 0.0
      %v1397 = vmax.f32 %v1333, 0.0
      %v1398 = vmax.f32 %v1334, 0.0
      %v1399 = vmax.f32 %v1335, 0.0
      %v1400 = vmax.f32 %v1336, 0.0
      %v1401 = vmax.f32 %v1337, 0.0
      %v1402 = vmax.f32 %v1338, 0.0
      %v1403 = vmax.f32 %v1339, 0.0
      %v1404 = vmax.f32 %v1340, 0.0
      %v1405 = vmax.f32 %v1341, 0.0
      %v1406 = vmax.f32 %v1342, 0.0
      %v1407 = vmax.f32 %v1343, 0.0
      %v1408 = vmax.f32 %v1344, 0.0
      %v1409 = vmax.f32 %v1345, 0.0
      %v1410 = vmax.f32 %v1346, 0.0
      %v1411 = vmax.f32 %v1347, 0.0
      %v1412 = vmax.f32 %v1348, 0.0
      %v1413 = vmax.f32 %v1349, 0.0
      %v1414 = vmax.f32 %v1350, 0.0
      %v1415 = vmax.f32 %v1351, 0.0
      %v1416 = vmax.f32 %v1352, 0.0
      %v1417 = vpack.c.bf16 %v1353, %v1353
      %v1418 = vpack.c.bf16 %v1354, %v1354
      %v1419 = vpack.c.bf16 %v1355, %v1355
      %v1420 = vpack.c.bf16 %v1356, %v1356
      %v1421 = vpack.c.bf16 %v1357, %v1357
      %v1422 = vpack.c.bf16 %v1358, %v1358
      %v1423 = vpack.c.bf16 %v1359, %v1359
      %v1424 = vpack.c.bf16 %v1360, %v1360
      %v1425 = vpack.c.bf16 %v1361, %v1361
      %v1426 = vpack.c.bf16 %v1362, %v1362
      %v1427 = vpack.c.bf16 %v1363, %v1363
      %v1428 = vpack.c.bf16 %v1364, %v1364
      %v1429 = vpack.c.bf16 %v1365, %v1365
      %v1430 = vpack.c.bf16 %v1366, %v1366
      %v1431 = vpack.c.bf16 %v1367, %v1367
      %v1432 = vpack.c.bf16 %v1368, %v1368
      %v1433 = vpack.c.bf16 %v1369, %v1369
      %v1434 = vpack.c.bf16 %v1370, %v1370
      %v1435 = vpack.c.bf16 %v1371, %v1371
      %v1436 = vpack.c.bf16 %v1372, %v1372
      %v1437 = vpack.c.bf16 %v1373, %v1373
      %v1438 = vpack.c.bf16 %v1374, %v1374
      %v1439 = vpack.c.bf16 %v1375, %v1375
      %v1440 = vpack.c.bf16 %v1376, %v1376
      %v1441 = vpack.c.bf16 %v1377, %v1377
      %v1442 = vpack.c.bf16 %v1378, %v1378
      %v1443 = vpack.c.bf16 %v1379, %v1379
      %v1444 = vpack.c.bf16 %v1380, %v1380
      %v1445 = vpack.c.bf16 %v1381, %v1381
      %v1446 = vpack.c.bf16 %v1382, %v1382
      %v1447 = vpack.c.bf16 %v1383, %v1383
      %v1448 = vpack.c.bf16 %v1384, %v1384
      %v1449 = vpack.c.bf16 %v1385, %v1385
      %v1450 = vpack.c.bf16 %v1386, %v1386
      %v1451 = vpack.c.bf16 %v1387, %v1387
      %v1452 = vpack.c.bf16 %v1388, %v1388
      %v1453 = vpack.c.bf16 %v1389, %v1389
      %v1454 = vpack.c.bf16 %v1390, %v1390
      %v1455 = vpack.c.bf16 %v1391, %v1391
      %v1456 = vpack.c.bf16 %v1392, %v1392
      %v1457 = vpack.c.bf16 %v1393, %v1393
      %v1458 = vpack.c.bf16 %v1394, %v1394
      %v1459 = vpack.c.bf16 %v1395, %v1395
      %v1460 = vpack.c.bf16 %v1396, %v1396
      %v1461 = vpack.c.bf16 %v1397, %v1397
      %v1462 = vpack.c.bf16 %v1398, %v1398
      %v1463 = vpack.c.bf16 %v1399, %v1399
      %v1464 = vpack.c.bf16 %v1400, %v1400
      %v1465 = vpack.c.bf16 %v1401, %v1401
      %v1466 = vpack.c.bf16 %v1402, %v1402
      %v1467 = vpack.c.bf16 %v1403, %v1403
      %v1468 = vpack.c.bf16 %v1404, %v1404
      %v1469 = vpack.c.bf16 %v1405, %v1405
      %v1470 = vpack.c.bf16 %v1406, %v1406
      %v1471 = vpack.c.bf16 %v1407, %v1407
      %v1472 = vpack.c.bf16 %v1408, %v1408
      %v1473 = vpack.c.bf16 %v1409, %v1409
      %v1474 = vpack.c.bf16 %v1410, %v1410
      %v1475 = vpack.c.bf16 %v1411, %v1411
      %v1476 = vpack.c.bf16 %v1412, %v1412
      %v1477 = vpack.c.bf16 %v1413, %v1413
      %v1478 = vpack.c.bf16 %v1414, %v1414
      %v1479 = vpack.c.bf16 %v1415, %v1415
      %v1480 = vpack.c.bf16 %v1416, %v1416
      %1481 = vst [vmem:[#allocation8] sm:$0xf] %v1417
      %1482 = vst [vmem:[#allocation8 + $0x4] sm:$0xf] %v1418
      %1483 = vst [vmem:[#allocation8 + $0x8] sm:$0xf] %v1419
      %1484 = vst [vmem:[#allocation8 + $0xc] sm:$0xf] %v1420
      %1485 = vst [vmem:[#allocation8 + $0x10] sm:$0xf] %v1421
      %1486 = vst [vmem:[#allocation8 + $0x14] sm:$0xf] %v1422
      %1487 = vst [vmem:[#allocation8 + $0x18] sm:$0xf] %v1423
      %1488 = vst [vmem:[#allocation8 + $0x1c] sm:$0xf] %v1424
      %1489 = vst [vmem:[#allocation8 + $0x20] sm:$0xf] %v1425
      %1490 = vst [vmem:[#allocation8 + $0x24] sm:$0xf] %v1426
      %1491 = vst [vmem:[#allocation8 + $0x28] sm:$0xf] %v1427
      %1492 = vst [vmem:[#allocation8 + $0x2c] sm:$0xf] %v1428
      %1493 = vst [vmem:[#allocation8 + $0x30] sm:$0xf] %v1429
      %1494 = vst [vmem:[#allocation8 + $0x34] sm:$0xf] %v1430
      %1495 = vst [vmem:[#allocation8 + $0x38] sm:$0xf] %v1431
      %1496 = vst [vmem:[#allocation8 + $0x3c] sm:$0xf] %v1432
      %1497 = vst [vmem:[#allocation8 + $0x40] sm:$0xf] %v1433
      %1498 = vst [vmem:[#allocation8 + $0x44] sm:$0xf] %v1434
      %1499 = vst [vmem:[#allocation8 + $0x48] sm:$0xf] %v1435
      %1500 = vst [vmem:[#allocation8 + $0x4c] sm:$0xf] %v1436
      %1501 = vst [vmem:[#allocation8 + $0x50] sm:$0xf] %v1437
      %1502 = vst [vmem:[#allocation8 + $0x54] sm:$0xf] %v1438
      %1503 = vst [vmem:[#allocation8 + $0x58] sm:$0xf] %v1439
      %1504 = vst [vmem:[#allocation8 + $0x5c] sm:$0xf] %v1440
      %1505 = vst [vmem:[#allocation8 + $0x60] sm:$0xf] %v1441
      %1506 = vst [vmem:[#allocation8 + $0x64] sm:$0xf] %v1442
      %1507 = vst [vmem:[#allocation8 + $0x68] sm:$0xf] %v1443
      %1508 = vst [vmem:[#allocation8 + $0x6c] sm:$0xf] %v1444
      %1509 = vst [vmem:[#allocation8 + $0x70] sm:$0xf] %v1445
      %1510 = vst [vmem:[#allocation8 + $0x74] sm:$0xf] %v1446
      %1511 = vst [vmem:[#allocation8 + $0x78] sm:$0xf] %v1447
      %1512 = vst [vmem:[#allocation8 + $0x7c] sm:$0xf] %v1448
      %1513 = vst [vmem:[#allocation8 + $0x80] sm:$0xf] %v1449
      %1514 = vst [vmem:[#allocation8 + $0x84] sm:$0xf] %v1450
      %1515 = vst [vmem:[#allocation8 + $0x88] sm:$0xf] %v1451
      %1516 = vst [vmem:[#allocation8 + $0x8c] sm:$0xf] %v1452
      %1517 = vst [vmem:[#allocation8 + $0x90] sm:$0xf] %v1453
      %1518 = vst [vmem:[#allocation8 + $0x94] sm:$0xf] %v1454
      %1519 = vst [vmem:[#allocation8 + $0x98] sm:$0xf] %v1455
      %1520 = vst [vmem:[#allocation8 + $0x9c] sm:$0xf] %v1456
      %1521 = vst [vmem:[#allocation8 + $0xa0] sm:$0xf] %v1457
      %1522 = vst [vmem:[#allocation8 + $0xa4] sm:$0xf] %v1458
      %1523 = vst [vmem:[#allocation8 + $0xa8] sm:$0xf] %v1459
      %1524 = vst [vmem:[#allocation8 + $0xac] sm:$0xf] %v1460
      %1525 = vst [vmem:[#allocation8 + $0xb0] sm:$0xf] %v1461
      %1526 = vst [vmem:[#allocation8 + $0xb4] sm:$0xf] %v1462
      %1527 = vst [vmem:[#allocation8 + $0xb8] sm:$0xf] %v1463
      %1528 = vst [vmem:[#allocation8 + $0xbc] sm:$0xf] %v1464
      %1529 = vst [vmem:[#allocation8 + $0xc0] sm:$0xf] %v1465
      %1530 = vst [vmem:[#allocation8 + $0xc4] sm:$0xf] %v1466
      %1531 = vst [vmem:[#allocation8 + $0xc8] sm:$0xf] %v1467
      %1532 = vst [vmem:[#allocation8 + $0xcc] sm:$0xf] %v1468
      %1533 = vst [vmem:[#allocation8 + $0xd0] sm:$0xf] %v1469
      %1534 = vst [vmem:[#allocation8 + $0xd4] sm:$0xf] %v1470
      %1535 = vst [vmem:[#allocation8 + $0xd8] sm:$0xf] %v1471
      %1536 = vst [vmem:[#allocation8 + $0xdc] sm:$0xf] %v1472
      %1537 = vst [vmem:[#allocation8 + $0xe0] sm:$0xf] %v1473
      %1538 = vst [vmem:[#allocation8 + $0xe4] sm:$0xf] %v1474
      %1539 = vst [vmem:[#allocation8 + $0xe8] sm:$0xf] %v1475
      %1540 = vst [vmem:[#allocation8 + $0xec] sm:$0xf] %v1476
      %1541 = vst [vmem:[#allocation8 + $0xf0] sm:$0xf] %v1477
      %1542 = vst [vmem:[#allocation8 + $0xf4] sm:$0xf] %v1478
      %1543 = vst [vmem:[#allocation8 + $0xf8] sm:$0xf] %v1479
      %1544 = vst [vmem:[#allocation8 + $0xfc] sm:$0xf] %v1480
    $region37: #{tpu_custom_call.1} parent=1 // pred_fallthru
      _
    // Predicated region
    $region38: #{tpu_custom_call.1} parent=1 // pred_check
      _
    $region39: #{tpu_custom_call.1} parent=1 // pred_check_branch
      %1546 = sbr.rel (0) target = $region41
    $region40: #{tpu_custom_call.1} parent=1 // pred_region
      %1548 = vsyncadd [#allocation5], 0
      %s1549 = sshll.u32 [#allocation8], 4
      %s1550 = int_to_ptr.vmem [resolvable:$true] %s1549
      %s1551 = sshll.u32 %s5, 4
      %s1552 = int_to_ptr.hbm [resolvable:$true] %s1551
      %1557 = dma.vmem_to_hbm [thread:$0]  %s1550, 4096, %s1552, [#allocation5], 64, 64, 4
    $region41: #{tpu_custom_call.1} parent=1 // pred_fallthru
      _
    // Predicated region
    $region42: #{tpu_custom_call.1} parent=1 // pred_check
      _
    $region43: #{tpu_custom_call.1} parent=1 // pred_check_branch
      %1559 = sbr.rel (0) target = $region45
    $region44: #{tpu_custom_call.1} parent=1 // pred_region
      %1561 = dma.done [#allocation5], 4096
    $region45: #{tpu_custom_call.1} parent=1 // pred_fallthru
      _
    %1562 = vsyncpa [#allocation4], 1
    %1563 = vsyncpa [#allocation7], 1
    %1564 = vsyncpa [#allocation5], 1

</llo_original>
